<compile_context>
chip_gen: v5e
topology: v5e:2x2
jax: 0.10.0
libtpu: 0.0.40
codegen_flags: <defaults>
</compile_context>

<pallas_src>
import numpy as np
import jax
import jax.numpy as jnp
from jax.experimental import pallas as pl
from jax.experimental.pallas import tpu as pltpu


def make_encoder_layer_kernel(batch, seq, d_model, num_heads, eps=1e-6):
    """Builds the Pallas kernel closure with static shape constants baked in."""
    d_k = d_model // num_heads
    inv_sqrt_dk = 1.0 / float(np.sqrt(d_k))

    def kernel(x_ref,
               ln0_a_ref, ln0_b_ref,
               wqkv_ref, bqkv_ref,
               wo_ref, bo_ref,
               ln1_a_ref, ln1_b_ref,
               w1_ref, b1_ref,
               w2_ref, b2_ref,
               out_ref):
        x = x_ref[...]                                        # (B*T, D) f32, lane-dense

        def layer_norm(v, a, b):
            # matches the torch LayerNorm in the spec: a*(v-mean)/(std+eps)+b,
            # with torch's UNBIASED std (divide by N-1).
            mu = jnp.mean(v, axis=-1, keepdims=True)
            var = jnp.sum((v - mu) ** 2, axis=-1, keepdims=True) * (1.0 / (d_model - 1))
            return a * (v - mu) / (jnp.sqrt(var) + eps) + b

        # ---------------- sublayer 0: x + SelfAttn(LayerNorm0(x)) ----------------
        n0 = layer_norm(x, ln0_a_ref[...], ln0_b_ref[...])
        # fused Q/K/V projection: one (B*T, D) @ (D, 3D) MXU pass (384 lane-aligned cols)
        qkv = (jnp.dot(n0, wqkv_ref[...], preferred_element_type=jnp.float32)
               + bqkv_ref[...])                               # (B*T, 3D)
        q = qkv[:, :d_model]                                  # 128-lane-aligned slices
        k = qkv[:, d_model:2 * d_model]
        v = qkv[:, 2 * d_model:]

        attn_rows = []
        for b in range(batch):                                # static -> fully unrolled
            r = slice(b * seq, (b + 1) * seq)
            acc = None                                        # (T, D) projected attn out
            for h in range(num_heads):
                c = slice(h * d_k, (h + 1) * d_k)
                qh = q[r, c]                                  # (T, d_k)
                kh = k[r, c]
                vh = v[r, c]
                # scores = qh @ kh^T / sqrt(d_k)  (dot_general avoids explicit transpose)
                s = jax.lax.dot_general(qh, kh, (((1,), (1,)), ((), ())),
                                        preferred_element_type=jnp.float32) * inv_sqrt_dk
                s = s - jnp.max(s, axis=-1, keepdims=True)
                p = jnp.exp(s)
                # softmax denom via EUP approx reciprocal (free slot, no VALU divide)
                p = p * pl.reciprocal(jnp.sum(p, axis=-1, keepdims=True), approx=True)
                ctx_h = jnp.dot(p, vh, preferred_element_type=jnp.float32)   # (T, d_k)
                # fuse Wo: project this head's context immediately and accumulate,
                # avoiding the lane-dim concat of heads.
                proj_h = jnp.dot(ctx_h, wo_ref[c, :],
                                 preferred_element_type=jnp.float32)         # (T, D)
                acc = proj_h if acc is None else acc + proj_h
            attn_rows.append(acc)
        # only a sublane-dim concat of (T, D) tiles (T is a multiple of 8) — cheap.
        attn_out = jnp.concatenate(attn_rows, axis=0) + bo_ref[...]          # (B*T, D)
        x1 = x + attn_out                                     # dropout = identity (eval)

        # ---------------- sublayer 1: x1 + FFN(LayerNorm1(x1)) -------------------
        n1 = layer_norm(x1, ln1_a_ref[...], ln1_b_ref[...])
        hdn = (jnp.dot(n1, w1_ref[...], preferred_element_type=jnp.float32)
               + b1_ref[...])
        hdn = jnp.maximum(hdn, 0.0)                           # ReLU
        ff = (jnp.dot(hdn, w2_ref[...], preferred_element_type=jnp.float32)
              + b2_ref[...])

        out_ref[...] = x1 + ff                                # lane-dense (B*T, 128) store

    return kernel


def encoder_layer_semca_forward(x, params, *, num_heads):
    """x: (B, T, d_model). Returns (B, T, d_model)."""
    B, T, D = x.shape
    kernel = make_encoder_layer_kernel(B, T, D, num_heads)
    x2d = x.reshape(B * T, D).astype(jnp.float32)             # lane-dense 2-D slab

    args = (x2d,
            params['ln0_a'], params['ln0_b'],
            params['wqkv'], params['bqkv'],
            params['wo'], params['bo'],
            params['ln1_a'], params['ln1_b'],
            params['w1'], params['b1'],
            params['w2'], params['b2'])

    out2d = pl.pallas_call(
        kernel,
        out_shape=jax.ShapeDtypeStruct((B * T, D), jnp.float32),
        in_specs=[pl.BlockSpec(memory_space=pltpu.MemorySpace.VMEM) for _ in args],
        out_specs=pl.BlockSpec(memory_space=pltpu.MemorySpace.VMEM),
        compiler_params=pltpu.CompilerParams(vmem_limit_bytes=32 * 1024 * 1024),
    )(*args)

    return out2d.reshape(B, T, D)


def init_params(key, d_model, d_ff):
    """Deterministic synthetic parameters (PyTorch-style uniform(+-1/sqrt(fan_in)));
    weights are stored pre-transposed as (in, out) so kernels do x @ W."""
    ks = jax.random.split(key, 12)
    s = 1.0 / float(np.sqrt(d_model))
    sf = 1.0 / float(np.sqrt(d_ff))

    def u(k, shape, lo, hi):
        return jax.random.uniform(k, shape, jnp.float32, lo, hi)

    return dict(
        ln0_a=u(ks[0], (1, d_model), 0.9, 1.1),
        ln0_b=u(ks[1], (1, d_model), -0.1, 0.1),
        wqkv=u(ks[2], (d_model, 3 * d_model), -s, s),   # [Wq.T | Wk.T | Wv.T] fused
        bqkv=u(ks[3], (1, 3 * d_model), -s, s),
        wo=u(ks[4], (d_model, d_model), -s, s),
        bo=u(ks[5], (1, d_model), -s, s),
        ln1_a=u(ks[6], (1, d_model), 0.9, 1.1),
        ln1_b=u(ks[7], (1, d_model), -0.1, 0.1),
        w1=u(ks[8], (d_model, d_ff), -s, s),
        b1=u(ks[9], (1, d_ff), -s, s),
        w2=u(ks[10], (d_ff, d_model), -sf, sf),
        b2=u(ks[11], (1, d_model), -sf, sf),
    )


def ref_forward(x, params, *, num_heads, eps=1e-6):
    """Pure-JAX reference of the same forward pass (for correctness check)."""
    B, T, D = x.shape
    d_k = D // num_heads

    def ln(v, a, b):
        mu = v.mean(-1, keepdims=True)
        var = ((v - mu) ** 2).sum(-1, keepdims=True) / (D - 1)
        return a * (v - mu) / (jnp.sqrt(var) + eps) + b

    n0 = ln(x, params['ln0_a'], params['ln0_b'])
    qkv = n0 @ params['wqkv'] + params['bqkv']
    q, k, v = jnp.split(qkv, 3, axis=-1)

    def heads(z):
        return z.reshape(B, T, num_heads, d_k).transpose(0, 2, 1, 3)

    qh, kh, vh = heads(q), heads(k), heads(v)
    scores = jnp.einsum('bhqd,bhkd->bhqk', qh, kh) / np.sqrt(d_k)
    p = jax.nn.softmax(scores, axis=-1)
    ctx = jnp.einsum('bhqk,bhkd->bhqd', p, vh).transpose(0, 2, 1, 3).reshape(B, T, D)
    x1 = x + (ctx @ params['wo'] + params['bo'])

    n1 = ln(x1, params['ln1_a'], params['ln1_b'])
    ff = jnp.maximum(n1 @ params['w1'] + params['b1'], 0.0) @ params['w2'] + params['b2']
    return x1 + ff


if __name__ == "__main__":
    # Small shapes implied by the module: d_model (=size) 128, 4 heads, d_ff 256.
    B, T, d_model, num_heads, d_ff = 2, 8, 128, 4, 256

    key = jax.random.PRNGKey(0)
    kx, kp = jax.random.split(key)
    x = jax.random.normal(kx, (B, T, d_model), jnp.float32)
    params = init_params(kp, d_model, d_ff)

    out = encoder_layer_semca_forward(x, params, num_heads=num_heads)
    out = jax.block_until_ready(out)

    ref = ref_forward(x, params, num_heads=num_heads)
    np.testing.assert_allclose(np.asarray(out), np.asarray(ref), rtol=1e-2, atol=1e-2)
    assert out.shape == (B, T, d_model)
    print("KERNEL_OK")
</pallas_src>

<mosaic_0001>
module attributes {stable_mosaic.version = 11 : i64} {
  func.func @kernel(%arg0: memref<16x128xf32, #tpu.memory_space<vmem>>, %arg1: memref<1x128xf32, #tpu.memory_space<vmem>>, %arg2: memref<1x128xf32, #tpu.memory_space<vmem>>, %arg3: memref<128x384xf32, #tpu.memory_space<vmem>>, %arg4: memref<1x384xf32, #tpu.memory_space<vmem>>, %arg5: memref<128x128xf32, #tpu.memory_space<vmem>>, %arg6: memref<1x128xf32, #tpu.memory_space<vmem>>, %arg7: memref<1x128xf32, #tpu.memory_space<vmem>>, %arg8: memref<1x128xf32, #tpu.memory_space<vmem>>, %arg9: memref<128x256xf32, #tpu.memory_space<vmem>>, %arg10: memref<1x256xf32, #tpu.memory_space<vmem>>, %arg11: memref<256x128xf32, #tpu.memory_space<vmem>>, %arg12: memref<1x128xf32, #tpu.memory_space<vmem>>, %arg13: memref<16x128xf32, #tpu.memory_space<vmem>>) attributes {dimension_semantics = [], scalar_prefetch = 0 : i64, scratch_operands = 0 : i64, tpu.core_type = #tpu.core_type<tc>} {
    %c0 = arith.constant 0 : index
    %c0_0 = arith.constant 0 : index
    %0 = vector.load %arg0[%c0, %c0_0] : memref<16x128xf32, #tpu.memory_space<vmem>>, vector<16x128xf32>
    %c0_1 = arith.constant 0 : index
    %c0_2 = arith.constant 0 : index
    %1 = vector.load %arg1[%c0_1, %c0_2] : memref<1x128xf32, #tpu.memory_space<vmem>>, vector<1x128xf32>
    %c0_3 = arith.constant 0 : index
    %c0_4 = arith.constant 0 : index
    %2 = vector.load %arg2[%c0_3, %c0_4] : memref<1x128xf32, #tpu.memory_space<vmem>>, vector<1x128xf32>
    %cst = arith.constant dense<0.000000e+00> : vector<16xf32>
    %3 = vector.multi_reduction <add>, %0, %cst [1] : vector<16x128xf32> to vector<16xf32>
    %4 = vector.shape_cast %3 : vector<16xf32> to vector<16x1xf32>
    %cst_5 = arith.constant 1.280000e+02 : f32
    %5 = vector.broadcast %cst_5 : f32 to vector<16x1xf32>
    %6 = arith.divf %4, %5 : vector<16x1xf32>
    %7 = vector.broadcast %6 : vector<16x1xf32> to vector<16x128xf32>
    %8 = arith.subf %0, %7 : vector<16x128xf32>
    %9 = arith.mulf %8, %8 : vector<16x128xf32>
    %cst_6 = arith.constant dense<0.000000e+00> : vector<16xf32>
    %10 = vector.multi_reduction <add>, %9, %cst_6 [1] : vector<16x128xf32> to vector<16xf32>
    %11 = vector.shape_cast %10 : vector<16xf32> to vector<16x1xf32>
    %cst_7 = arith.constant 0.00787401571 : f32
    %12 = vector.broadcast %cst_7 : f32 to vector<16x1xf32>
    %13 = arith.mulf %11, %12 : vector<16x1xf32>
    %14 = vector.broadcast %6 : vector<16x1xf32> to vector<16x128xf32>
    %15 = arith.subf %0, %14 : vector<16x128xf32>
    %16 = vector.broadcast %1 : vector<1x128xf32> to vector<16x128xf32>
    %17 = arith.mulf %16, %15 : vector<16x128xf32>
    %18 = math.sqrt %13 : vector<16x1xf32>
    %cst_8 = arith.constant 9.99999997E-7 : f32
    %19 = vector.broadcast %cst_8 : f32 to vector<16x1xf32>
    %20 = arith.addf %18, %19 : vector<16x1xf32>
    %21 = vector.broadcast %20 : vector<16x1xf32> to vector<16x128xf32>
    %22 = arith.divf %17, %21 : vector<16x128xf32>
    %23 = vector.broadcast %2 : vector<1x128xf32> to vector<16x128xf32>
    %24 = arith.addf %22, %23 : vector<16x128xf32>
    %c0_9 = arith.constant 0 : index
    %c0_10 = arith.constant 0 : index
    %25 = vector.load %arg3[%c0_9, %c0_10] : memref<128x384xf32, #tpu.memory_space<vmem>>, vector<128x384xf32>
    %cst_11 = arith.constant dense<0.000000e+00> : vector<16x384xf32>
    %26 = tpu.matmul %24, %25, %cst_11 {dimension_numbers = #tpu.dot_dimension_numbers<[1], [0], [0], [1], [0, 0, 1, 1], [], []>} : vector<16x128xf32>, vector<128x384xf32>, vector<16x384xf32> -> vector<16x384xf32>
    %c0_12 = arith.constant 0 : index
    %c0_13 = arith.constant 0 : index
    %27 = vector.load %arg4[%c0_12, %c0_13] : memref<1x384xf32, #tpu.memory_space<vmem>>, vector<1x384xf32>
    %28 = vector.broadcast %27 : vector<1x384xf32> to vector<16x384xf32>
    %29 = arith.addf %26, %28 : vector<16x384xf32>
    %30 = vector.extract_strided_slice %29 {offsets = [0, 0], sizes = [16, 128], strides = [1, 1]} : vector<16x384xf32> to vector<16x128xf32>
    %31 = vector.extract_strided_slice %29 {offsets = [0, 128], sizes = [16, 128], strides = [1, 1]} : vector<16x384xf32> to vector<16x128xf32>
    %32 = vector.extract_strided_slice %29 {offsets = [0, 256], sizes = [16, 128], strides = [1, 1]} : vector<16x384xf32> to vector<16x128xf32>
    %33 = vector.extract_strided_slice %30 {offsets = [0, 0], sizes = [8, 32], strides = [1, 1]} : vector<16x128xf32> to vector<8x32xf32>
    %34 = vector.extract_strided_slice %31 {offsets = [0, 0], sizes = [8, 32], strides = [1, 1]} : vector<16x128xf32> to vector<8x32xf32>
    %35 = vector.extract_strided_slice %32 {offsets = [0, 0], sizes = [8, 32], strides = [1, 1]} : vector<16x128xf32> to vector<8x32xf32>
    %cst_14 = arith.constant dense<0.000000e+00> : vector<8x8xf32>
    %36 = tpu.matmul %33, %34, %cst_14 {dimension_numbers = #tpu.dot_dimension_numbers<[1], [1], [0], [0], [0, 0, 1, 0], [], []>} : vector<8x32xf32>, vector<8x32xf32>, vector<8x8xf32> -> vector<8x8xf32>
    %cst_15 = arith.constant 0.176776692 : f32
    %37 = vector.broadcast %cst_15 : f32 to vector<8x8xf32>
    %38 = arith.mulf %36, %37 : vector<8x8xf32>
    %cst_16 = arith.constant dense<0xFF800000> : vector<8xf32>
    %39 = vector.multi_reduction <maximumf>, %38, %cst_16 [1] : vector<8x8xf32> to vector<8xf32>
    %40 = vector.shape_cast %39 : vector<8xf32> to vector<8x1xf32>
    %41 = vector.broadcast %40 : vector<8x1xf32> to vector<8x8xf32>
    %42 = arith.subf %38, %41 : vector<8x8xf32>
    %43 = math.exp %42 : vector<8x8xf32>
    %cst_17 = arith.constant dense<0.000000e+00> : vector<8xf32>
    %44 = vector.multi_reduction <add>, %43, %cst_17 [1] : vector<8x8xf32> to vector<8xf32>
    %45 = vector.shape_cast %44 : vector<8xf32> to vector<8x1xf32>
    %46 = tpu.reciprocal %45 {approx = true} : vector<8x1xf32> -> vector<8x1xf32>
    %47 = vector.broadcast %46 : vector<8x1xf32> to vector<8x8xf32>
    %48 = arith.mulf %43, %47 : vector<8x8xf32>
    %cst_18 = arith.constant dense<0.000000e+00> : vector<8x32xf32>
    %49 = tpu.matmul %48, %35, %cst_18 {dimension_numbers = #tpu.dot_dimension_numbers<[1], [0], [0], [1], [0, 0, 1, 1], [], []>} : vector<8x8xf32>, vector<8x32xf32>, vector<8x32xf32> -> vector<8x32xf32>
    %c0_19 = arith.constant 0 : index
    %c0_20 = arith.constant 0 : index
    %50 = vector.load %arg5[%c0_19, %c0_20] : memref<128x128xf32, #tpu.memory_space<vmem>>, vector<32x128xf32>
    %cst_21 = arith.constant dense<0.000000e+00> : vector<8x128xf32>
    %51 = tpu.matmul %49, %50, %cst_21 {dimension_numbers = #tpu.dot_dimension_numbers<[1], [0], [0], [1], [0, 0, 1, 1], [], []>} : vector<8x32xf32>, vector<32x128xf32>, vector<8x128xf32> -> vector<8x128xf32>
    %52 = vector.extract_strided_slice %30 {offsets = [0, 32], sizes = [8, 32], strides = [1, 1]} : vector<16x128xf32> to vector<8x32xf32>
    %53 = vector.extract_strided_slice %31 {offsets = [0, 32], sizes = [8, 32], strides = [1, 1]} : vector<16x128xf32> to vector<8x32xf32>
    %54 = vector.extract_strided_slice %32 {offsets = [0, 32], sizes = [8, 32], strides = [1, 1]} : vector<16x128xf32> to vector<8x32xf32>
    %cst_22 = arith.constant dense<0.000000e+00> : vector<8x8xf32>
    %55 = tpu.matmul %52, %53, %cst_22 {dimension_numbers = #tpu.dot_dimension_numbers<[1], [1], [0], [0], [0, 0, 1, 0], [], []>} : vector<8x32xf32>, vector<8x32xf32>, vector<8x8xf32> -> vector<8x8xf32>
    %cst_23 = arith.constant 0.176776692 : f32
    %56 = vector.broadcast %cst_23 : f32 to vector<8x8xf32>
    %57 = arith.mulf %55, %56 : vector<8x8xf32>
    %cst_24 = arith.constant dense<0xFF800000> : vector<8xf32>
    %58 = vector.multi_reduction <maximumf>, %57, %cst_24 [1] : vector<8x8xf32> to vector<8xf32>
    %59 = vector.shape_cast %58 : vector<8xf32> to vector<8x1xf32>
    %60 = vector.broadcast %59 : vector<8x1xf32> to vector<8x8xf32>
    %61 = arith.subf %57, %60 : vector<8x8xf32>
    %62 = math.exp %61 : vector<8x8xf32>
    %cst_25 = arith.constant dense<0.000000e+00> : vector<8xf32>
    %63 = vector.multi_reduction <add>, %62, %cst_25 [1] : vector<8x8xf32> to vector<8xf32>
    %64 = vector.shape_cast %63 : vector<8xf32> to vector<8x1xf32>
    %65 = tpu.reciprocal %64 {approx = true} : vector<8x1xf32> -> vector<8x1xf32>
    %66 = vector.broadcast %65 : vector<8x1xf32> to vector<8x8xf32>
    %67 = arith.mulf %62, %66 : vector<8x8xf32>
    %cst_26 = arith.constant dense<0.000000e+00> : vector<8x32xf32>
    %68 = tpu.matmul %67, %54, %cst_26 {dimension_numbers = #tpu.dot_dimension_numbers<[1], [0], [0], [1], [0, 0, 1, 1], [], []>} : vector<8x8xf32>, vector<8x32xf32>, vector<8x32xf32> -> vector<8x32xf32>
    %c32 = arith.constant 32 : index
    %c0_27 = arith.constant 0 : index
    %69 = vector.load %arg5[%c32, %c0_27] : memref<128x128xf32, #tpu.memory_space<vmem>>, vector<32x128xf32>
    %cst_28 = arith.constant dense<0.000000e+00> : vector<8x128xf32>
    %70 = tpu.matmul %68, %69, %cst_28 {dimension_numbers = #tpu.dot_dimension_numbers<[1], [0], [0], [1], [0, 0, 1, 1], [], []>} : vector<8x32xf32>, vector<32x128xf32>, vector<8x128xf32> -> vector<8x128xf32>
    %71 = arith.addf %51, %70 : vector<8x128xf32>
    %72 = vector.extract_strided_slice %30 {offsets = [0, 64], sizes = [8, 32], strides = [1, 1]} : vector<16x128xf32> to vector<8x32xf32>
    %73 = vector.extract_strided_slice %31 {offsets = [0, 64], sizes = [8, 32], strides = [1, 1]} : vector<16x128xf32> to vector<8x32xf32>
    %74 = vector.extract_strided_slice %32 {offsets = [0, 64], sizes = [8, 32], strides = [1, 1]} : vector<16x128xf32> to vector<8x32xf32>
    %cst_29 = arith.constant dense<0.000000e+00> : vector<8x8xf32>
    %75 = tpu.matmul %72, %73, %cst_29 {dimension_numbers = #tpu.dot_dimension_numbers<[1], [1], [0], [0], [0, 0, 1, 0], [], []>} : vector<8x32xf32>, vector<8x32xf32>, vector<8x8xf32> -> vector<8x8xf32>
    %cst_30 = arith.constant 0.176776692 : f32
    %76 = vector.broadcast %cst_30 : f32 to vector<8x8xf32>
    %77 = arith.mulf %75, %76 : vector<8x8xf32>
    %cst_31 = arith.constant dense<0xFF800000> : vector<8xf32>
    %78 = vector.multi_reduction <maximumf>, %77, %cst_31 [1] : vector<8x8xf32> to vector<8xf32>
    %79 = vector.shape_cast %78 : vector<8xf32> to vector<8x1xf32>
    %80 = vector.broadcast %79 : vector<8x1xf32> to vector<8x8xf32>
    %81 = arith.subf %77, %80 : vector<8x8xf32>
    %82 = math.exp %81 : vector<8x8xf32>
    %cst_32 = arith.constant dense<0.000000e+00> : vector<8xf32>
    %83 = vector.multi_reduction <add>, %82, %cst_32 [1] : vector<8x8xf32> to vector<8xf32>
    %84 = vector.shape_cast %83 : vector<8xf32> to vector<8x1xf32>
    %85 = tpu.reciprocal %84 {approx = true} : vector<8x1xf32> -> vector<8x1xf32>
    %86 = vector.broadcast %85 : vector<8x1xf32> to vector<8x8xf32>
    %87 = arith.mulf %82, %86 : vector<8x8xf32>
    %cst_33 = arith.constant dense<0.000000e+00> : vector<8x32xf32>
    %88 = tpu.matmul %87, %74, %cst_33 {dimension_numbers = #tpu.dot_dimension_numbers<[1], [0], [0], [1], [0, 0, 1, 1], [], []>} : vector<8x8xf32>, vector<8x32xf32>, vector<8x32xf32> -> vector<8x32xf32>
    %c64 = arith.constant 64 : index
    %c0_34 = arith.constant 0 : index
    %89 = vector.load %arg5[%c64, %c0_34] : memref<128x128xf32, #tpu.memory_space<vmem>>, vector<32x128xf32>
    %cst_35 = arith.constant dense<0.000000e+00> : vector<8x128xf32>
    %90 = tpu.matmul %88, %89, %cst_35 {dimension_numbers = #tpu.dot_dimension_numbers<[1], [0], [0], [1], [0, 0, 1, 1], [], []>} : vector<8x32xf32>, vector<32x128xf32>, vector<8x128xf32> -> vector<8x128xf32>
    %91 = arith.addf %71, %90 : vector<8x128xf32>
    %92 = vector.extract_strided_slice %30 {offsets = [0, 96], sizes = [8, 32], strides = [1, 1]} : vector<16x128xf32> to vector<8x32xf32>
    %93 = vector.extract_strided_slice %31 {offsets = [0, 96], sizes = [8, 32], strides = [1, 1]} : vector<16x128xf32> to vector<8x32xf32>
    %94 = vector.extract_strided_slice %32 {offsets = [0, 96], sizes = [8, 32], strides = [1, 1]} : vector<16x128xf32> to vector<8x32xf32>
    %cst_36 = arith.constant dense<0.000000e+00> : vector<8x8xf32>
    %95 = tpu.matmul %92, %93, %cst_36 {dimension_numbers = #tpu.dot_dimension_numbers<[1], [1], [0], [0], [0, 0, 1, 0], [], []>} : vector<8x32xf32>, vector<8x32xf32>, vector<8x8xf32> -> vector<8x8xf32>
    %cst_37 = arith.constant 0.176776692 : f32
    %96 = vector.broadcast %cst_37 : f32 to vector<8x8xf32>
    %97 = arith.mulf %95, %96 : vector<8x8xf32>
    %cst_38 = arith.constant dense<0xFF800000> : vector<8xf32>
    %98 = vector.multi_reduction <maximumf>, %97, %cst_38 [1] : vector<8x8xf32> to vector<8xf32>
    %99 = vector.shape_cast %98 : vector<8xf32> to vector<8x1xf32>
    %100 = vector.broadcast %99 : vector<8x1xf32> to vector<8x8xf32>
    %101 = arith.subf %97, %100 : vector<8x8xf32>
    %102 = math.exp %101 : vector<8x8xf32>
    %cst_39 = arith.constant dense<0.000000e+00> : vector<8xf32>
    %103 = vector.multi_reduction <add>, %102, %cst_39 [1] : vector<8x8xf32> to vector<8xf32>
    %104 = vector.shape_cast %103 : vector<8xf32> to vector<8x1xf32>
    %105 = tpu.reciprocal %104 {approx = true} : vector<8x1xf32> -> vector<8x1xf32>
    %106 = vector.broadcast %105 : vector<8x1xf32> to vector<8x8xf32>
    %107 = arith.mulf %102, %106 : vector<8x8xf32>
    %cst_40 = arith.constant dense<0.000000e+00> : vector<8x32xf32>
    %108 = tpu.matmul %107, %94, %cst_40 {dimension_numbers = #tpu.dot_dimension_numbers<[1], [0], [0], [1], [0, 0, 1, 1], [], []>} : vector<8x8xf32>, vector<8x32xf32>, vector<8x32xf32> -> vector<8x32xf32>
    %c96 = arith.constant 96 : index
    %c0_41 = arith.constant 0 : index
    %109 = vector.load %arg5[%c96, %c0_41] : memref<128x128xf32, #tpu.memory_space<vmem>>, vector<32x128xf32>
    %cst_42 = arith.constant dense<0.000000e+00> : vector<8x128xf32>
    %110 = tpu.matmul %108, %109, %cst_42 {dimension_numbers = #tpu.dot_dimension_numbers<[1], [0], [0], [1], [0, 0, 1, 1], [], []>} : vector<8x32xf32>, vector<32x128xf32>, vector<8x128xf32> -> vector<8x128xf32>
    %111 = arith.addf %91, %110 : vector<8x128xf32>
    %112 = vector.extract_strided_slice %30 {offsets = [8, 0], sizes = [8, 32], strides = [1, 1]} : vector<16x128xf32> to vector<8x32xf32>
    %113 = vector.extract_strided_slice %31 {offsets = [8, 0], sizes = [8, 32], strides = [1, 1]} : vector<16x128xf32> to vector<8x32xf32>
    %114 = vector.extract_strided_slice %32 {offsets = [8, 0], sizes = [8, 32], strides = [1, 1]} : vector<16x128xf32> to vector<8x32xf32>
    %cst_43 = arith.constant dense<0.000000e+00> : vector<8x8xf32>
    %115 = tpu.matmul %112, %113, %cst_43 {dimension_numbers = #tpu.dot_dimension_numbers<[1], [1], [0], [0], [0, 0, 1, 0], [], []>} : vector<8x32xf32>, vector<8x32xf32>, vector<8x8xf32> -> vector<8x8xf32>
    %cst_44 = arith.constant 0.176776692 : f32
    %116 = vector.broadcast %cst_44 : f32 to vector<8x8xf32>
    %117 = arith.mulf %115, %116 : vector<8x8xf32>
    %cst_45 = arith.constant dense<0xFF800000> : vector<8xf32>
    %118 = vector.multi_reduction <maximumf>, %117, %cst_45 [1] : vector<8x8xf32> to vector<8xf32>
    %119 = vector.shape_cast %118 : vector<8xf32> to vector<8x1xf32>
    %120 = vector.broadcast %119 : vector<8x1xf32> to vector<8x8xf32>
    %121 = arith.subf %117, %120 : vector<8x8xf32>
    %122 = math.exp %121 : vector<8x8xf32>
    %cst_46 = arith.constant dense<0.000000e+00> : vector<8xf32>
    %123 = vector.multi_reduction <add>, %122, %cst_46 [1] : vector<8x8xf32> to vector<8xf32>
    %124 = vector.shape_cast %123 : vector<8xf32> to vector<8x1xf32>
    %125 = tpu.reciprocal %124 {approx = true} : vector<8x1xf32> -> vector<8x1xf32>
    %126 = vector.broadcast %125 : vector<8x1xf32> to vector<8x8xf32>
    %127 = arith.mulf %122, %126 : vector<8x8xf32>
    %cst_47 = arith.constant dense<0.000000e+00> : vector<8x32xf32>
    %128 = tpu.matmul %127, %114, %cst_47 {dimension_numbers = #tpu.dot_dimension_numbers<[1], [0], [0], [1], [0, 0, 1, 1], [], []>} : vector<8x8xf32>, vector<8x32xf32>, vector<8x32xf32> -> vector<8x32xf32>
    %c0_48 = arith.constant 0 : index
    %c0_49 = arith.constant 0 : index
    %129 = vector.load %arg5[%c0_48, %c0_49] : memref<128x128xf32, #tpu.memory_space<vmem>>, vector<32x128xf32>
    %cst_50 = arith.constant dense<0.000000e+00> : vector<8x128xf32>
    %130 = tpu.matmul %128, %129, %cst_50 {dimension_numbers = #tpu.dot_dimension_numbers<[1], [0], [0], [1], [0, 0, 1, 1], [], []>} : vector<8x32xf32>, vector<32x128xf32>, vector<8x128xf32> -> vector<8x128xf32>
    %131 = vector.extract_strided_slice %30 {offsets = [8, 32], sizes = [8, 32], strides = [1, 1]} : vector<16x128xf32> to vector<8x32xf32>
    %132 = vector.extract_strided_slice %31 {offsets = [8, 32], sizes = [8, 32], strides = [1, 1]} : vector<16x128xf32> to vector<8x32xf32>
    %133 = vector.extract_strided_slice %32 {offsets = [8, 32], sizes = [8, 32], strides = [1, 1]} : vector<16x128xf32> to vector<8x32xf32>
    %cst_51 = arith.constant dense<0.000000e+00> : vector<8x8xf32>
    %134 = tpu.matmul %131, %132, %cst_51 {dimension_numbers = #tpu.dot_dimension_numbers<[1], [1], [0], [0], [0, 0, 1, 0], [], []>} : vector<8x32xf32>, vector<8x32xf32>, vector<8x8xf32> -> vector<8x8xf32>
    %cst_52 = arith.constant 0.176776692 : f32
    %135 = vector.broadcast %cst_52 : f32 to vector<8x8xf32>
    %136 = arith.mulf %134, %135 : vector<8x8xf32>
    %cst_53 = arith.constant dense<0xFF800000> : vector<8xf32>
    %137 = vector.multi_reduction <maximumf>, %136, %cst_53 [1] : vector<8x8xf32> to vector<8xf32>
    %138 = vector.shape_cast %137 : vector<8xf32> to vector<8x1xf32>
    %139 = vector.broadcast %138 : vector<8x1xf32> to vector<8x8xf32>
    %140 = arith.subf %136, %139 : vector<8x8xf32>
    %141 = math.exp %140 : vector<8x8xf32>
    %cst_54 = arith.constant dense<0.000000e+00> : vector<8xf32>
    %142 = vector.multi_reduction <add>, %141, %cst_54 [1] : vector<8x8xf32> to vector<8xf32>
    %143 = vector.shape_cast %142 : vector<8xf32> to vector<8x1xf32>
    %144 = tpu.reciprocal %143 {approx = true} : vector<8x1xf32> -> vector<8x1xf32>
    %145 = vector.broadcast %144 : vector<8x1xf32> to vector<8x8xf32>
    %146 = arith.mulf %141, %145 : vector<8x8xf32>
    %cst_55 = arith.constant dense<0.000000e+00> : vector<8x32xf32>
    %147 = tpu.matmul %146, %133, %cst_55 {dimension_numbers = #tpu.dot_dimension_numbers<[1], [0], [0], [1], [0, 0, 1, 1], [], []>} : vector<8x8xf32>, vector<8x32xf32>, vector<8x32xf32> -> vector<8x32xf32>
    %c32_56 = arith.constant 32 : index
    %c0_57 = arith.constant 0 : index
    %148 = vector.load %arg5[%c32_56, %c0_57] : memref<128x128xf32, #tpu.memory_space<vmem>>, vector<32x128xf32>
    %cst_58 = arith.constant dense<0.000000e+00> : vector<8x128xf32>
    %149 = tpu.matmul %147, %148, %cst_58 {dimension_numbers = #tpu.dot_dimension_numbers<[1], [0], [0], [1], [0, 0, 1, 1], [], []>} : vector<8x32xf32>, vector<32x128xf32>, vector<8x128xf32> -> vector<8x128xf32>
    %150 = arith.addf %130, %149 : vector<8x128xf32>
    %151 = vector.extract_strided_slice %30 {offsets = [8, 64], sizes = [8, 32], strides = [1, 1]} : vector<16x128xf32> to vector<8x32xf32>
    %152 = vector.extract_strided_slice %31 {offsets = [8, 64], sizes = [8, 32], strides = [1, 1]} : vector<16x128xf32> to vector<8x32xf32>
    %153 = vector.extract_strided_slice %32 {offsets = [8, 64], sizes = [8, 32], strides = [1, 1]} : vector<16x128xf32> to vector<8x32xf32>
    %cst_59 = arith.constant dense<0.000000e+00> : vector<8x8xf32>
    %154 = tpu.matmul %151, %152, %cst_59 {dimension_numbers = #tpu.dot_dimension_numbers<[1], [1], [0], [0], [0, 0, 1, 0], [], []>} : vector<8x32xf32>, vector<8x32xf32>, vector<8x8xf32> -> vector<8x8xf32>
    %cst_60 = arith.constant 0.176776692 : f32
    %155 = vector.broadcast %cst_60 : f32 to vector<8x8xf32>
    %156 = arith.mulf %154, %155 : vector<8x8xf32>
    %cst_61 = arith.constant dense<0xFF800000> : vector<8xf32>
    %157 = vector.multi_reduction <maximumf>, %156, %cst_61 [1] : vector<8x8xf32> to vector<8xf32>
    %158 = vector.shape_cast %157 : vector<8xf32> to vector<8x1xf32>
    %159 = vector.broadcast %158 : vector<8x1xf32> to vector<8x8xf32>
    %160 = arith.subf %156, %159 : vector<8x8xf32>
    %161 = math.exp %160 : vector<8x8xf32>
    %cst_62 = arith.constant dense<0.000000e+00> : vector<8xf32>
    %162 = vector.multi_reduction <add>, %161, %cst_62 [1] : vector<8x8xf32> to vector<8xf32>
    %163 = vector.shape_cast %162 : vector<8xf32> to vector<8x1xf32>
    %164 = tpu.reciprocal %163 {approx = true} : vector<8x1xf32> -> vector<8x1xf32>
    %165 = vector.broadcast %164 : vector<8x1xf32> to vector<8x8xf32>
    %166 = arith.mulf %161, %165 : vector<8x8xf32>
    %cst_63 = arith.constant dense<0.000000e+00> : vector<8x32xf32>
    %167 = tpu.matmul %166, %153, %cst_63 {dimension_numbers = #tpu.dot_dimension_numbers<[1], [0], [0], [1], [0, 0, 1, 1], [], []>} : vector<8x8xf32>, vector<8x32xf32>, vector<8x32xf32> -> vector<8x32xf32>
    %c64_64 = arith.constant 64 : index
    %c0_65 = arith.constant 0 : index
    %168 = vector.load %arg5[%c64_64, %c0_65] : memref<128x128xf32, #tpu.memory_space<vmem>>, vector<32x128xf32>
    %cst_66 = arith.constant dense<0.000000e+00> : vector<8x128xf32>
    %169 = tpu.matmul %167, %168, %cst_66 {dimension_numbers = #tpu.dot_dimension_numbers<[1], [0], [0], [1], [0, 0, 1, 1], [], []>} : vector<8x32xf32>, vector<32x128xf32>, vector<8x128xf32> -> vector<8x128xf32>
    %170 = arith.addf %150, %169 : vector<8x128xf32>
    %171 = vector.extract_strided_slice %30 {offsets = [8, 96], sizes = [8, 32], strides = [1, 1]} : vector<16x128xf32> to vector<8x32xf32>
    %172 = vector.extract_strided_slice %31 {offsets = [8, 96], sizes = [8, 32], strides = [1, 1]} : vector<16x128xf32> to vector<8x32xf32>
    %173 = vector.extract_strided_slice %32 {offsets = [8, 96], sizes = [8, 32], strides = [1, 1]} : vector<16x128xf32> to vector<8x32xf32>
    %cst_67 = arith.constant dense<0.000000e+00> : vector<8x8xf32>
    %174 = tpu.matmul %171, %172, %cst_67 {dimension_numbers = #tpu.dot_dimension_numbers<[1], [1], [0], [0], [0, 0, 1, 0], [], []>} : vector<8x32xf32>, vector<8x32xf32>, vector<8x8xf32> -> vector<8x8xf32>
    %cst_68 = arith.constant 0.176776692 : f32
    %175 = vector.broadcast %cst_68 : f32 to vector<8x8xf32>
    %176 = arith.mulf %174, %175 : vector<8x8xf32>
    %cst_69 = arith.constant dense<0xFF800000> : vector<8xf32>
    %177 = vector.multi_reduction <maximumf>, %176, %cst_69 [1] : vector<8x8xf32> to vector<8xf32>
    %178 = vector.shape_cast %177 : vector<8xf32> to vector<8x1xf32>
    %179 = vector.broadcast %178 : vector<8x1xf32> to vector<8x8xf32>
    %180 = arith.subf %176, %179 : vector<8x8xf32>
    %181 = math.exp %180 : vector<8x8xf32>
    %cst_70 = arith.constant dense<0.000000e+00> : vector<8xf32>
    %182 = vector.multi_reduction <add>, %181, %cst_70 [1] : vector<8x8xf32> to vector<8xf32>
    %183 = vector.shape_cast %182 : vector<8xf32> to vector<8x1xf32>
    %184 = tpu.reciprocal %183 {approx = true} : vector<8x1xf32> -> vector<8x1xf32>
    %185 = vector.broadcast %184 : vector<8x1xf32> to vector<8x8xf32>
    %186 = arith.mulf %181, %185 : vector<8x8xf32>
    %cst_71 = arith.constant dense<0.000000e+00> : vector<8x32xf32>
    %187 = tpu.matmul %186, %173, %cst_71 {dimension_numbers = #tpu.dot_dimension_numbers<[1], [0], [0], [1], [0, 0, 1, 1], [], []>} : vector<8x8xf32>, vector<8x32xf32>, vector<8x32xf32> -> vector<8x32xf32>
    %c96_72 = arith.constant 96 : index
    %c0_73 = arith.constant 0 : index
    %188 = vector.load %arg5[%c96_72, %c0_73] : memref<128x128xf32, #tpu.memory_space<vmem>>, vector<32x128xf32>
    %cst_74 = arith.constant dense<0.000000e+00> : vector<8x128xf32>
    %189 = tpu.matmul %187, %188, %cst_74 {dimension_numbers = #tpu.dot_dimension_numbers<[1], [0], [0], [1], [0, 0, 1, 1], [], []>} : vector<8x32xf32>, vector<32x128xf32>, vector<8x128xf32> -> vector<8x128xf32>
    %190 = arith.addf %170, %189 : vector<8x128xf32>
    %191 = tpu.concatenate %111, %190 in 0 : vector<8x128xf32>, vector<8x128xf32> -> vector<16x128xf32>
    %c0_75 = arith.constant 0 : index
    %c0_76 = arith.constant 0 : index
    %192 = vector.load %arg6[%c0_75, %c0_76] : memref<1x128xf32, #tpu.memory_space<vmem>>, vector<1x128xf32>
    %193 = vector.broadcast %192 : vector<1x128xf32> to vector<16x128xf32>
    %194 = arith.addf %191, %193 : vector<16x128xf32>
    %195 = arith.addf %0, %194 : vector<16x128xf32>
    %c0_77 = arith.constant 0 : index
    %c0_78 = arith.constant 0 : index
    %196 = vector.load %arg7[%c0_77, %c0_78] : memref<1x128xf32, #tpu.memory_space<vmem>>, vector<1x128xf32>
    %c0_79 = arith.constant 0 : index
    %c0_80 = arith.constant 0 : index
    %197 = vector.load %arg8[%c0_79, %c0_80] : memref<1x128xf32, #tpu.memory_space<vmem>>, vector<1x128xf32>
    %cst_81 = arith.constant dense<0.000000e+00> : vector<16xf32>
    %198 = vector.multi_reduction <add>, %195, %cst_81 [1] : vector<16x128xf32> to vector<16xf32>
    %199 = vector.shape_cast %198 : vector<16xf32> to vector<16x1xf32>
    %cst_82 = arith.constant 1.280000e+02 : f32
    %200 = vector.broadcast %cst_82 : f32 to vector<16x1xf32>
    %201 = arith.divf %199, %200 : vector<16x1xf32>
    %202 = vector.broadcast %201 : vector<16x1xf32> to vector<16x128xf32>
    %203 = arith.subf %195, %202 : vector<16x128xf32>
    %204 = arith.mulf %203, %203 : vector<16x128xf32>
    %cst_83 = arith.constant dense<0.000000e+00> : vector<16xf32>
    %205 = vector.multi_reduction <add>, %204, %cst_83 [1] : vector<16x128xf32> to vector<16xf32>
    %206 = vector.shape_cast %205 : vector<16xf32> to vector<16x1xf32>
    %cst_84 = arith.constant 0.00787401571 : f32
    %207 = vector.broadcast %cst_84 : f32 to vector<16x1xf32>
    %208 = arith.mulf %206, %207 : vector<16x1xf32>
    %209 = vector.broadcast %201 : vector<16x1xf32> to vector<16x128xf32>
    %210 = arith.subf %195, %209 : vector<16x128xf32>
    %211 = vector.broadcast %196 : vector<1x128xf32> to vector<16x128xf32>
    %212 = arith.mulf %211, %210 : vector<16x128xf32>
    %213 = math.sqrt %208 : vector<16x1xf32>
    %cst_85 = arith.constant 9.99999997E-7 : f32
    %214 = vector.broadcast %cst_85 : f32 to vector<16x1xf32>
    %215 = arith.addf %213, %214 : vector<16x1xf32>
    %216 = vector.broadcast %215 : vector<16x1xf32> to vector<16x128xf32>
    %217 = arith.divf %212, %216 : vector<16x128xf32>
    %218 = vector.broadcast %197 : vector<1x128xf32> to vector<16x128xf32>
    %219 = arith.addf %217, %218 : vector<16x128xf32>
    %c0_86 = arith.constant 0 : index
    %c0_87 = arith.constant 0 : index
    %220 = vector.load %arg9[%c0_86, %c0_87] : memref<128x256xf32, #tpu.memory_space<vmem>>, vector<128x256xf32>
    %cst_88 = arith.constant dense<0.000000e+00> : vector<16x256xf32>
    %221 = tpu.matmul %219, %220, %cst_88 {dimension_numbers = #tpu.dot_dimension_numbers<[1], [0], [0], [1], [0, 0, 1, 1], [], []>} : vector<16x128xf32>, vector<128x256xf32>, vector<16x256xf32> -> vector<16x256xf32>
    %c0_89 = arith.constant 0 : index
    %c0_90 = arith.constant 0 : index
    %222 = vector.load %arg10[%c0_89, %c0_90] : memref<1x256xf32, #tpu.memory_space<vmem>>, vector<1x256xf32>
    %223 = vector.broadcast %222 : vector<1x256xf32> to vector<16x256xf32>
    %224 = arith.addf %221, %223 : vector<16x256xf32>
    %cst_91 = arith.constant 0.000000e+00 : f32
    %225 = vector.broadcast %cst_91 : f32 to vector<16x256xf32>
    %226 = arith.maximumf %224, %225 : vector<16x256xf32>
    %c0_92 = arith.constant 0 : index
    %c0_93 = arith.constant 0 : index
    %227 = vector.load %arg11[%c0_92, %c0_93] : memref<256x128xf32, #tpu.memory_space<vmem>>, vector<256x128xf32>
    %cst_94 = arith.constant dense<0.000000e+00> : vector<16x128xf32>
    %228 = tpu.matmul %226, %227, %cst_94 {dimension_numbers = #tpu.dot_dimension_numbers<[1], [0], [0], [1], [0, 0, 1, 1], [], []>} : vector<16x256xf32>, vector<256x128xf32>, vector<16x128xf32> -> vector<16x128xf32>
    %c0_95 = arith.constant 0 : index
    %c0_96 = arith.constant 0 : index
    %229 = vector.load %arg12[%c0_95, %c0_96] : memref<1x128xf32, #tpu.memory_space<vmem>>, vector<1x128xf32>
    %230 = vector.broadcast %229 : vector<1x128xf32> to vector<16x128xf32>
    %231 = arith.addf %228, %230 : vector<16x128xf32>
    %232 = arith.addf %195, %231 : vector<16x128xf32>
    %c0_97 = arith.constant 0 : index
    %c0_98 = arith.constant 0 : index
    %233 = vector.load %arg13[%c0_97, %c0_98] : memref<16x128xf32, #tpu.memory_space<vmem>>, vector<16x128xf32>
    tpu.vector_store %arg13[%c0_97, %c0_98], %232 {strides = array<i32>} : memref<16x128xf32, #tpu.memory_space<vmem>>, vector<16x128xf32>,
    return
  }
}

</mosaic_0001>

<llo_original>
// kernel: tpu_custom_call.1
$region0: #{tpu_custom_call.1}
  #allocation0 [shape = 'u32[]', space=smem, size = 0x4, offset = 0x4, fixed_abs, tag = 'smem constant byte address 0x4 - core index']
  #allocation1 [shape = 'u32[72,128]{1,0:T(1,128)}', space=vmem, size = 0x9000, scoped, tag = 'internal scratch']
  %s0 = inlined_call_operand.hbm [shape: f32[16,128], index: 0, kind: input, shape index: {}]
  %s1 = inlined_call_operand.hbm [shape: f32[1,128], index: 1, kind: input, shape index: {}]
  %s2 = inlined_call_operand.hbm [shape: f32[1,128], index: 2, kind: input, shape index: {}]
  %s3 = inlined_call_operand.hbm [shape: f32[128,384], index: 3, kind: input, shape index: {}]
  %s4 = inlined_call_operand.vmem [shape: f32[1,384], index: 4, kind: input, shape index: {}]
  %s5 = inlined_call_operand.hbm [shape: f32[128,128], index: 5, kind: input, shape index: {}]
  %s6 = inlined_call_operand.hbm [shape: f32[1,128], index: 6, kind: input, shape index: {}]
  %s7 = inlined_call_operand.vmem [shape: f32[1,128], index: 7, kind: input, shape index: {}]
  %s8 = inlined_call_operand.vmem [shape: f32[1,128], index: 8, kind: input, shape index: {}]
  %s9 = inlined_call_operand.hbm [shape: f32[128,256], index: 9, kind: input, shape index: {}]
  %s10 = inlined_call_operand.vmem [shape: f32[1,256], index: 10, kind: input, shape index: {}]
  %s11 = inlined_call_operand.hbm [shape: f32[256,128], index: 11, kind: input, shape index: {}]
  %s12 = inlined_call_operand.vmem [shape: f32[1,128], index: 12, kind: input, shape index: {}]
  %s13 = inlined_call_operand.hbm [shape: f32[16,128], index: 13, kind: output, shape index: {}]
  %s14 = sld [smem:[#allocation0]]
  $region94: #{tpu_custom_call.1} parent=0
    _
  %s16 = ssub.s32 1, %s14
  %s17 = scalar_select 0, %s16, %s14
  $region1: #{tpu_custom_call.1} parent=0
    #allocation2 [shape = 'u8[8192]{0}', space=vmem, size = 0x2000, scoped, tag = 'input window, operand 0, single buffered']
    #allocation3 [shape = 's32[1]{0}', space=sflag, size = 0x4, scoped, tag = 'scoped memory for tpu_custom_call.1']
    #allocation4 [shape = 's32[1]{0}', space=sflag, size = 0x4, scoped, tag = 'scoped memory for tpu_custom_call.1']
    #allocation5 [shape = 'u8[512]{0}', space=vmem, size = 0x400, scoped, tag = 'input window, operand 1, single buffered']
    #allocation6 [shape = 's32[1]{0}', space=sflag, size = 0x4, scoped, tag = 'scoped memory for tpu_custom_call.1']
    #allocation7 [shape = 'u8[512]{0}', space=vmem, size = 0x400, scoped, tag = 'input window, operand 2, single buffered']
    #allocation8 [shape = 'u8[196608]{0}', space=vmem, size = 0x30000, scoped, tag = 'input window, operand 3, single buffered']
    #allocation9 [shape = 's32[1]{0}', space=sflag, size = 0x4, scoped, tag = 'scoped memory for tpu_custom_call.1']
    #allocation10 [shape = 'u8[65536]{0}', space=vmem, size = 0x10000, scoped, tag = 'input window, operand 5, single buffered']
    #allocation11 [shape = 'u8[512]{0}', space=vmem, size = 0x400, scoped, tag = 'input window, operand 6, single buffered']
    #allocation12 [shape = 's32[1]{0}', space=sflag, size = 0x4, scoped, tag = 'scoped memory for tpu_custom_call.1']
    #allocation13 [shape = 'u8[131072]{0}', space=vmem, size = 0x20000, scoped, tag = 'input window, operand 9, single buffered']
    #allocation14 [shape = 'u8[131072]{0}', space=vmem, size = 0x20000, scoped, tag = 'input window, operand 11, single buffered']
    #allocation15 [shape = 's32[1]{0}', space=sflag, size = 0x4, scoped, tag = 'scoped memory for tpu_custom_call.1']
    #allocation16 [shape = 'u8[8192]{0}', space=vmem, size = 0x2000, scoped, tag = 'output window, operand 0, single buffered']
    %18 = vsyncpa [#allocation3], 0
    %19 = vsyncpa [#allocation6], 0
    %20 = vsyncpa [#allocation9], 0
    %21 = vsyncpa [#allocation12], 0
    %22 = vsyncpa [#allocation15], 0
    %23 = vsyncpa [#allocation4], 0
    // Predicated region
    $region2: #{tpu_custom_call.1} parent=1 // pred_check
      _
    $region3: #{tpu_custom_call.1} parent=1 // pred_check_branch
      %25 = sbr.rel (0) target = $region5
    $region4: #{tpu_custom_call.1} parent=1 // pred_region
      %27 = vsyncadd [#allocation3], 0
      %s28 = sshll.u32 %s0, 4
      %s29 = int_to_ptr.hbm [resolvable:$true] %s28
      %s30 = sshll.u32 [#allocation2], 4
      %s31 = int_to_ptr.vmem [resolvable:$true] %s30
      %36 = dma.hbm_to_vmem [thread:$0]  %s29, 256, %s31, [#allocation3], 128, 128, 8
    $region5: #{tpu_custom_call.1} parent=1 // pred_fallthru
      _
    // Predicated region
    $region6: #{tpu_custom_call.1} parent=1 // pred_check
      _
    $region7: #{tpu_custom_call.1} parent=1 // pred_check_branch
      %38 = sbr.rel (0) target = $region9
    $region8: #{tpu_custom_call.1} parent=1 // pred_region
      %40 = vsyncadd [#allocation6], 0
      %s42 = sshll.u32 %s1, 4
      %s43 = int_to_ptr.hbm [resolvable:$true] %s42
      %s44 = sshll.u32 [#allocation5], 4
      %s45 = int_to_ptr.vmem [resolvable:$true] %s44
      %47 = dma.hbm_to_vmem [thread:$0]  %s43, 16, %s45, [#allocation6]
    $region9: #{tpu_custom_call.1} parent=1 // pred_fallthru
      _
    // Predicated region
    $region10: #{tpu_custom_call.1} parent=1 // pred_check
      _
    $region11: #{tpu_custom_call.1} parent=1 // pred_check_branch
      %49 = sbr.rel (0) target = $region13
    $region12: #{tpu_custom_call.1} parent=1 // pred_region
      %51 = vsyncadd [#allocation6], 0
      %s53 = sshll.u32 %s2, 4
      %s54 = int_to_ptr.hbm [resolvable:$true] %s53
      %s55 = sshll.u32 [#allocation7], 4
      %s56 = int_to_ptr.vmem [resolvable:$true] %s55
      %58 = dma.hbm_to_vmem [thread:$0]  %s54, 16, %s56, [#allocation6]
    $region13: #{tpu_custom_call.1} parent=1 // pred_fallthru
      _
    // Predicated region
    $region14: #{tpu_custom_call.1} parent=1 // pred_check
      _
    $region15: #{tpu_custom_call.1} parent=1 // pred_check_branch
      %60 = sbr.rel (0) target = $region17
    $region16: #{tpu_custom_call.1} parent=1 // pred_region
      %62 = vsyncadd [#allocation9], 0
      %s63 = sshll.u32 %s3, 4
      %s64 = int_to_ptr.hbm [resolvable:$true] %s63
      %s65 = sshll.u32 [#allocation8], 4
      %s66 = int_to_ptr.vmem [resolvable:$true] %s65
      %71 = dma.hbm_to_vmem [thread:$0]  %s64, 6144, %s66, [#allocation9], 384, 384, 24
    $region17: #{tpu_custom_call.1} parent=1 // pred_fallthru
      _
    // Predicated region
    $region18: #{tpu_custom_call.1} parent=1 // pred_check
      _
    $region19: #{tpu_custom_call.1} parent=1 // pred_check_branch
      %73 = sbr.rel (0) target = $region21
    $region20: #{tpu_custom_call.1} parent=1 // pred_region
      _
    $region21: #{tpu_custom_call.1} parent=1 // pred_fallthru
      _
    // Predicated region
    $region22: #{tpu_custom_call.1} parent=1 // pred_check
      _
    $region23: #{tpu_custom_call.1} parent=1 // pred_check_branch
      %75 = sbr.rel (0) target = $region25
    $region24: #{tpu_custom_call.1} parent=1 // pred_region
      %77 = vsyncadd [#allocation9], 0
      %s78 = sshll.u32 %s5, 4
      %s79 = int_to_ptr.hbm [resolvable:$true] %s78
      %s80 = sshll.u32 [#allocation10], 4
      %s81 = int_to_ptr.vmem [resolvable:$true] %s80
      %86 = dma.hbm_to_vmem [thread:$0]  %s79, 2048, %s81, [#allocation9], 128, 128, 8
    $region25: #{tpu_custom_call.1} parent=1 // pred_fallthru
      _
    // Predicated region
    $region26: #{tpu_custom_call.1} parent=1 // pred_check
      _
    $region27: #{tpu_custom_call.1} parent=1 // pred_check_branch
      %88 = sbr.rel (0) target = $region29
    $region28: #{tpu_custom_call.1} parent=1 // pred_region
      %90 = vsyncadd [#allocation12], 0
      %s92 = sshll.u32 %s6, 4
      %s93 = int_to_ptr.hbm [resolvable:$true] %s92
      %s94 = sshll.u32 [#allocation11], 4
      %s95 = int_to_ptr.vmem [resolvable:$true] %s94
      %97 = dma.hbm_to_vmem [thread:$0]  %s93, 16, %s95, [#allocation12]
    $region29: #{tpu_custom_call.1} parent=1 // pred_fallthru
      _
    // Predicated region
    $region30: #{tpu_custom_call.1} parent=1 // pred_check
      _
    $region31: #{tpu_custom_call.1} parent=1 // pred_check_branch
      %99 = sbr.rel (0) target = $region33
    $region32: #{tpu_custom_call.1} parent=1 // pred_region
      _
    $region33: #{tpu_custom_call.1} parent=1 // pred_fallthru
      _
    // Predicated region
    $region34: #{tpu_custom_call.1} parent=1 // pred_check
      _
    $region35: #{tpu_custom_call.1} parent=1 // pred_check_branch
      %101 = sbr.rel (0) target = $region37
    $region36: #{tpu_custom_call.1} parent=1 // pred_region
      _
    $region37: #{tpu_custom_call.1} parent=1 // pred_fallthru
      _
    // Predicated region
    $region38: #{tpu_custom_call.1} parent=1 // pred_check
      _
    $region39: #{tpu_custom_call.1} parent=1 // pred_check_branch
      %103 = sbr.rel (0) target = $region41
    $region40: #{tpu_custom_call.1} parent=1 // pred_region
      %105 = vsyncadd [#allocation12], 0
      %s106 = sshll.u32 %s9, 4
      %s107 = int_to_ptr.hbm [resolvable:$true] %s106
      %s108 = sshll.u32 [#allocation13], 4
      %s109 = int_to_ptr.vmem [resolvable:$true] %s108
      %114 = dma.hbm_to_vmem [thread:$0]  %s107, 4096, %s109, [#allocation12], 256, 256, 16
    $region41: #{tpu_custom_call.1} parent=1 // pred_fallthru
      _
    // Predicated region
    $region42: #{tpu_custom_call.1} parent=1 // pred_check
      _
    $region43: #{tpu_custom_call.1} parent=1 // pred_check_branch
      %116 = sbr.rel (0) target = $region45
    $region44: #{tpu_custom_call.1} parent=1 // pred_region
      _
    $region45: #{tpu_custom_call.1} parent=1 // pred_fallthru
      _
    // Predicated region
    $region46: #{tpu_custom_call.1} parent=1 // pred_check
      _
    $region47: #{tpu_custom_call.1} parent=1 // pred_check_branch
      %118 = sbr.rel (0) target = $region49
    $region48: #{tpu_custom_call.1} parent=1 // pred_region
      %120 = vsyncadd [#allocation15], 0
      %s121 = sshll.u32 %s11, 4
      %s122 = int_to_ptr.hbm [resolvable:$true] %s121
      %s123 = sshll.u32 [#allocation14], 4
      %s124 = int_to_ptr.vmem [resolvable:$true] %s123
      %129 = dma.hbm_to_vmem [thread:$0]  %s122, 4096, %s124, [#allocation15], 128, 128, 8
    $region49: #{tpu_custom_call.1} parent=1 // pred_fallthru
      _
    // Predicated region
    $region50: #{tpu_custom_call.1} parent=1 // pred_check
      _
    $region51: #{tpu_custom_call.1} parent=1 // pred_check_branch
      %131 = sbr.rel (0) target = $region53
    $region52: #{tpu_custom_call.1} parent=1 // pred_region
      _
    $region53: #{tpu_custom_call.1} parent=1 // pred_fallthru
      _
    // Predicated region
    $region54: #{tpu_custom_call.1} parent=1 // pred_check
      _
    $region55: #{tpu_custom_call.1} parent=1 // pred_check_branch
      %133 = sbr.rel (0) target = $region57
    $region56: #{tpu_custom_call.1} parent=1 // pred_region
      %135 = dma.done [#allocation3], 256
    $region57: #{tpu_custom_call.1} parent=1 // pred_fallthru
      _
    // Predicated region
    $region58: #{tpu_custom_call.1} parent=1 // pred_check
      _
    $region59: #{tpu_custom_call.1} parent=1 // pred_check_branch
      %137 = sbr.rel (0) target = $region61
    $region60: #{tpu_custom_call.1} parent=1 // pred_region
      %139 = dma.done [#allocation6], 16
    $region61: #{tpu_custom_call.1} parent=1 // pred_fallthru
      _
    // Predicated region
    $region62: #{tpu_custom_call.1} parent=1 // pred_check
      _
    $region63: #{tpu_custom_call.1} parent=1 // pred_check_branch
      %141 = sbr.rel (0) target = $region65
    $region64: #{tpu_custom_call.1} parent=1 // pred_region
      %143 = dma.done [#allocation6], 16
    $region65: #{tpu_custom_call.1} parent=1 // pred_fallthru
      _
    // Predicated region
    $region66: #{tpu_custom_call.1} parent=1 // pred_check
      _
    $region67: #{tpu_custom_call.1} parent=1 // pred_check_branch
      %145 = sbr.rel (0) target = $region69
    $region68: #{tpu_custom_call.1} parent=1 // pred_region
      %147 = dma.done [#allocation9], 6144
    $region69: #{tpu_custom_call.1} parent=1 // pred_fallthru
      _
    // Predicated region
    $region70: #{tpu_custom_call.1} parent=1 // pred_check
      _
    $region71: #{tpu_custom_call.1} parent=1 // pred_check_branch
      %149 = sbr.rel (0) target = $region73
    $region72: #{tpu_custom_call.1} parent=1 // pred_region
      %151 = dma.done [#allocation9], 2048
    $region73: #{tpu_custom_call.1} parent=1 // pred_fallthru
      _
    // Predicated region
    $region74: #{tpu_custom_call.1} parent=1 // pred_check
      _
    $region75: #{tpu_custom_call.1} parent=1 // pred_check_branch
      %153 = sbr.rel (0) target = $region77
    $region76: #{tpu_custom_call.1} parent=1 // pred_region
      %155 = dma.done [#allocation12], 16
    $region77: #{tpu_custom_call.1} parent=1 // pred_fallthru
      _
    // Predicated region
    $region78: #{tpu_custom_call.1} parent=1 // pred_check
      _
    $region79: #{tpu_custom_call.1} parent=1 // pred_check_branch
      %157 = sbr.rel (0) target = $region81
    $region80: #{tpu_custom_call.1} parent=1 // pred_region
      %159 = dma.done [#allocation12], 4096
    $region81: #{tpu_custom_call.1} parent=1 // pred_fallthru
      _
    // Predicated region
    $region82: #{tpu_custom_call.1} parent=1 // pred_check
      _
    $region83: #{tpu_custom_call.1} parent=1 // pred_check_branch
      %161 = sbr.rel (0) target = $region85
    $region84: #{tpu_custom_call.1} parent=1 // pred_region
      %163 = dma.done [#allocation15], 4096
    $region85: #{tpu_custom_call.1} parent=1 // pred_fallthru
      _
    %v164 = vld [vmem:[#allocation2] sm:$0xff]
    %v165 = vld [vmem:[#allocation2 + $0x8] sm:$0xff]
    %v166 = vld [vmem:[#allocation5] sm:$0x1]
    %v167 = vld [vmem:[#allocation7] sm:$0x1]
    %168 = vadd.xlane.f32.xlu0 %v164
    %v169 = vpop.xlane.xlu0 %168
    %170 = vadd.xlane.f32.xlu0 %v165
    %v171 = vpop.xlane.xlu0 %170
    %v172 = vrcp.pop 128.0
    %v173 = vmul.f32 128.0, %v172
    %v174 = vsub.f32 1.0, %v173
    %v175 = vmul.f32 %v172, %v174
    %v176 = vadd.f32 %v172, %v175
    %vm177 = vweird.f32 %v172
    %v178 = vsel %vm177, %v172, %v176
    %v179 = vmul.f32 %v169, %v178
    %v180 = vmul.f32 %v171, %v178
    %v181 = vsub.f32 %v164, %v179
    %v182 = vsub.f32 %v165, %v180
    %v183 = vmul.f32 %v181, %v181
    %v184 = vmul.f32 %v182, %v182
    %185 = vadd.xlane.f32.xlu0 %v183
    %v186 = vpop.xlane.xlu0 %185
    %187 = vadd.xlane.f32.xlu0 %v184
    %v188 = vpop.xlane.xlu0 %187
    %v189 = vmul.f32 %v186, 0.007874016
    %v190 = vmul.f32 %v188, 0.007874016
    %v192 = vperm.slane %v166, 0
    %v194 = vmul.f32 %v192, %v181
    %v195 = vmul.f32 %v192, %v182
    %v196 = vrsqrt.pop %v189
    %v197 = vmul.f32 %v196, %v189
    %v198 = vmul.f32 %v197, %v196
    %v199 = vmul.f32 0.5, %v198
    %v200 = vsub.f32 1.5, %v199
    %v201 = vmul.f32 %v196, %v200
    %v202 = vmul.f32 %v189, %v201
    %vm203 = vcmp.eq.f32.partialorder %v189, inf
    %v204 = vsel %vm203, %v189, %v202
    %vm205 = vcmp.eq.f32.partialorder %v189, 0.0
    %v206 = vand.u32 %v189, 2147483648
    %v207 = vsel %vm205, %v206, %v204
    %v208 = vrsqrt.pop %v190
    %v209 = vmul.f32 %v208, %v190
    %v210 = vmul.f32 %v209, %v208
    %v211 = vmul.f32 0.5, %v210
    %v212 = vsub.f32 1.5, %v211
    %v213 = vmul.f32 %v208, %v212
    %v214 = vmul.f32 %v190, %v213
    %vm215 = vcmp.eq.f32.partialorder %v190, inf
    %v216 = vsel %vm215, %v190, %v214
    %vm217 = vcmp.eq.f32.partialorder %v190, 0.0
    %v218 = vand.u32 %v190, 2147483648
    %v219 = vsel %vm217, %v218, %v216
    %v220 = vadd.f32 %v207, 1e-06
    %v221 = vadd.f32 %v219, 1e-06
    %v222 = vrcp.pop %v220
    %v223 = vmul.f32 %v220, %v222
    %v224 = vsub.f32 1.0, %v223
    %v225 = vmul.f32 %v222, %v224
    %v226 = vadd.f32 %v222, %v225
    %vm227 = vweird.f32 %v220
    %vm228 = vweird.f32 %v222
    %vm229 = vmor %vm227, %vm228
    %v230 = vsel %vm229, %v222, %v226
    %v231 = vand.u32 2147483647, %v220
    %vm232 = vcmp.eq.f32.partialorder %v231, 8.507059e+37
    %v233 = vand.u32 %v220, 2147483648
    %v234 = vor.u32 1.1754944e-38, %v233
    %v235 = vsel %vm232, %v234, %v230
    %v236 = vmul.f32 %v194, %v235
    %v237 = vrcp.pop %v221
    %v238 = vmul.f32 %v221, %v237
    %v239 = vsub.f32 1.0, %v238
    %v240 = vmul.f32 %v237, %v239
    %v241 = vadd.f32 %v237, %v240
    %vm242 = vweird.f32 %v221
    %vm243 = vweird.f32 %v237
    %vm244 = vmor %vm242, %vm243
    %v245 = vsel %vm244, %v237, %v241
    %v246 = vand.u32 2147483647, %v221
    %vm247 = vcmp.eq.f32.partialorder %v246, 8.507059e+37
    %v248 = vand.u32 %v221, 2147483648
    %v249 = vor.u32 1.1754944e-38, %v248
    %v250 = vsel %vm247, %v249, %v245
    %v251 = vmul.f32 %v195, %v250
    %v253 = vperm.slane %v167, 0
    %v255 = vadd.f32 %v236, %v253
    %v256 = vadd.f32 %v251, %v253
    %v257 = vld [vmem:[#allocation8] sm:$0xff]
    %v258 = vld [vmem:[#allocation8 + $0x8] sm:$0xff]
    %v259 = vld [vmem:[#allocation8 + $0x10] sm:$0xff]
    %v260 = vld [vmem:[#allocation8 + $0x18] sm:$0xff]
    %v261 = vld [vmem:[#allocation8 + $0x20] sm:$0xff]
    %v262 = vld [vmem:[#allocation8 + $0x28] sm:$0xff]
    %v263 = vld [vmem:[#allocation8 + $0x30] sm:$0xff]
    %v264 = vld [vmem:[#allocation8 + $0x38] sm:$0xff]
    %v265 = vld [vmem:[#allocation8 + $0x40] sm:$0xff]
    %v266 = vld [vmem:[#allocation8 + $0x48] sm:$0xff]
    %v267 = vld [vmem:[#allocation8 + $0x50] sm:$0xff]
    %v268 = vld [vmem:[#allocation8 + $0x58] sm:$0xff]
    %v269 = vld [vmem:[#allocation8 + $0x60] sm:$0xff]
    %v270 = vld [vmem:[#allocation8 + $0x68] sm:$0xff]
    %v271 = vld [vmem:[#allocation8 + $0x70] sm:$0xff]
    %v272 = vld [vmem:[#allocation8 + $0x78] sm:$0xff]
    %v273 = vld [vmem:[#allocation8 + $0x80] sm:$0xff]
    %v274 = vld [vmem:[#allocation8 + $0x88] sm:$0xff]
    %v275 = vld [vmem:[#allocation8 + $0x90] sm:$0xff]
    %v276 = vld [vmem:[#allocation8 + $0x98] sm:$0xff]
    %v277 = vld [vmem:[#allocation8 + $0xa0] sm:$0xff]
    %v278 = vld [vmem:[#allocation8 + $0xa8] sm:$0xff]
    %v279 = vld [vmem:[#allocation8 + $0xb0] sm:$0xff]
    %v280 = vld [vmem:[#allocation8 + $0xb8] sm:$0xff]
    %v281 = vld [vmem:[#allocation8 + $0xc0] sm:$0xff]
    %v282 = vld [vmem:[#allocation8 + $0xc8] sm:$0xff]
    %v283 = vld [vmem:[#allocation8 + $0xd0] sm:$0xff]
    %v284 = vld [vmem:[#allocation8 + $0xd8] sm:$0xff]
    %v285 = vld [vmem:[#allocation8 + $0xe0] sm:$0xff]
    %v286 = vld [vmem:[#allocation8 + $0xe8] sm:$0xff]
    %v287 = vld [vmem:[#allocation8 + $0xf0] sm:$0xff]
    %v288 = vld [vmem:[#allocation8 + $0xf8] sm:$0xff]
    %v289 = vld [vmem:[#allocation8 + $0x100] sm:$0xff]
    %v290 = vld [vmem:[#allocation8 + $0x108] sm:$0xff]
    %v291 = vld [vmem:[#allocation8 + $0x110] sm:$0xff]
    %v292 = vld [vmem:[#allocation8 + $0x118] sm:$0xff]
    %v293 = vld [vmem:[#allocation8 + $0x120] sm:$0xff]
    %v294 = vld [vmem:[#allocation8 + $0x128] sm:$0xff]
    %v295 = vld [vmem:[#allocation8 + $0x130] sm:$0xff]
    %v296 = vld [vmem:[#allocation8 + $0x138] sm:$0xff]
    %v297 = vld [vmem:[#allocation8 + $0x140] sm:$0xff]
    %v298 = vld [vmem:[#allocation8 + $0x148] sm:$0xff]
    %v299 = vld [vmem:[#allocation8 + $0x150] sm:$0xff]
    %v300 = vld [vmem:[#allocation8 + $0x158] sm:$0xff]
    %v301 = vld [vmem:[#allocation8 + $0x160] sm:$0xff]
    %v302 = vld [vmem:[#allocation8 + $0x168] sm:$0xff]
    %v303 = vld [vmem:[#allocation8 + $0x170] sm:$0xff]
    %v304 = vld [vmem:[#allocation8 + $0x178] sm:$0xff]
    %v305 = vld [vmem:[%s4] sm:$0x7]
    %v307 = vperm.slane %v305, 0
    %v308 = vperm.slane %v305, 1
    %v309 = vperm.slane %v305, 2
    %313 = vmatpush.msra.mxu0 %v302
    %314 = vmatpush.msra.mxu0 %v299
    %315 = vmatpush.msra.mxu0 %v296
    %316 = vmatpush.msra.mxu0 %v293
    %317 = vmatpush.msra.mxu0 %v290
    %318 = vmatpush.msra.mxu0 %v287
    %319 = vmatpush.msra.mxu0 %v284
    %320 = vmatpush.msra.mxu0 %v281
    %321 = vmatpush.msra.mxu0 %v278
    %322 = vmatpush.msra.mxu0 %v275
    %323 = vmatpush.msra.mxu0 %v272
    %324 = vmatpush.msra.mxu0 %v269
    %325 = vmatpush.msra.mxu0 %v266
    %326 = vmatpush.msra.mxu0 %v263
    %327 = vmatpush.msra.mxu0 %v260
    %328 = vmatpush.msra.mxu0 %v257
    %329 = vmatmul.f32.gmra.mxu0 %v255
    %v330 = vpop.f32.mrf.mxu0
    %v331 = vadd.f32 %v307, %v330
    %332 = vmatmul.f32.gmra.mxu0 %v256
    %v333 = vpop.f32.mrf.mxu0
    %v334 = vadd.f32 %v307, %v333
    %335 = vdwg.mxu0
    %336 = vmatpush.msra.mxu0 %v303
    %337 = vmatpush.msra.mxu0 %v300
    %338 = vmatpush.msra.mxu0 %v297
    %339 = vmatpush.msra.mxu0 %v294
    %340 = vmatpush.msra.mxu0 %v291
    %341 = vmatpush.msra.mxu0 %v288
    %342 = vmatpush.msra.mxu0 %v285
    %343 = vmatpush.msra.mxu0 %v282
    %344 = vmatpush.msra.mxu0 %v279
    %345 = vmatpush.msra.mxu0 %v276
    %346 = vmatpush.msra.mxu0 %v273
    %347 = vmatpush.msra.mxu0 %v270
    %348 = vmatpush.msra.mxu0 %v267
    %349 = vmatpush.msra.mxu0 %v264
    %350 = vmatpush.msra.mxu0 %v261
    %351 = vmatpush.msra.mxu0 %v258
    %352 = vmatmul.f32.gmra.mxu0 %v255
    %v353 = vpop.f32.mrf.mxu0
    %v354 = vadd.f32 %v308, %v353
    %355 = vmatmul.f32.gmra.mxu0 %v256
    %v356 = vpop.f32.mrf.mxu0
    %v357 = vadd.f32 %v308, %v356
    %358 = vdwg.mxu0
    %359 = vmatpush.msra.mxu0 %v304
    %360 = vmatpush.msra.mxu0 %v301
    %361 = vmatpush.msra.mxu0 %v298
    %362 = vmatpush.msra.mxu0 %v295
    %363 = vmatpush.msra.mxu0 %v292
    %364 = vmatpush.msra.mxu0 %v289
    %365 = vmatpush.msra.mxu0 %v286
    %366 = vmatpush.msra.mxu0 %v283
    %367 = vmatpush.msra.mxu0 %v280
    %368 = vmatpush.msra.mxu0 %v277
    %369 = vmatpush.msra.mxu0 %v274
    %370 = vmatpush.msra.mxu0 %v271
    %371 = vmatpush.msra.mxu0 %v268
    %372 = vmatpush.msra.mxu0 %v265
    %373 = vmatpush.msra.mxu0 %v262
    %374 = vmatpush.msra.mxu0 %v259
    %375 = vmatmul.f32.gmra.mxu0 %v255
    %v376 = vpop.f32.mrf.mxu0
    %v377 = vadd.f32 %v309, %v376
    %378 = vmatmul.f32.gmra.mxu0 %v256
    %v379 = vpop.f32.mrf.mxu0
    %v380 = vadd.f32 %v309, %v379
    %381 = vdwg.mxu0
    %vm382 = vcmask 261120
    %v384 = vsel %vm382, %v331, 0
    %v387 = vsel %vm382, %v354, 0
    %389 = vmatpush.xpose.msra.mxu0 0.0
    %390 = vmatpush.xpose.msra.mxu0 0.0
    %391 = vmatpush.xpose.msra.mxu0 0.0
    %392 = vmatpush.xpose.msra.mxu0 0.0
    %393 = vmatpush.xpose.msra.mxu0 0.0
    %394 = vmatpush.xpose.msra.mxu0 0.0
    %395 = vmatpush.xpose.msra.mxu0 0.0
    %396 = vmatpush.xpose.msra.mxu0 0.0
    %397 = vmatpush.xpose.msra.mxu0 0.0
    %398 = vmatpush.xpose.msra.mxu0 0.0
    %399 = vmatpush.xpose.msra.mxu0 0.0
    %400 = vmatpush.xpose.msra.mxu0 0.0
    %401 = vmatpush.xpose.msra.mxu0 0.0
    %402 = vmatpush.xpose.msra.mxu0 0.0
    %403 = vmatpush.xpose.msra.mxu0 0.0
    %404 = vmatpush.xpose.msra.mxu0 %v387
    %405 = vmatmul.f32.gmra.mxu0 %v384
    %v406 = vpop.f32.mrf.mxu0
    %v407 = vadd.f32 0.0, %v406
    %408 = vdwg.mxu0
    %v409 = vmul.f32 %v407, 0.17677669
    %vm410 = vcmask 64512
    %v411 = vsel %vm410, %v409, -inf
    %412 = vmax.xlane.f32.xlu0 %v411
    %v413 = vpop.xlane.xlu0 %412
    %v414 = vsub.f32 %v409, %v413
    %v415 = vmul.f32 %v414, 1.442695
    %v416 = vpow.pop %v415
    %v417 = vsel %vm410, %v416, 0.0
    %418 = vadd.xlane.f32.xlu0 %v417
    %v419 = vpop.xlane.xlu0 %418
    %v420 = vrcp.pop %v419
    %v421 = vmul.f32 %v416, %v420
    %v423 = vsel %vm410, %v421, 0
    %425 = vmatpush.msra.mxu0 0.0
    %426 = vmatpush.msra.mxu0 0.0
    %427 = vmatpush.msra.mxu0 0.0
    %428 = vmatpush.msra.mxu0 0.0
    %429 = vmatpush.msra.mxu0 0.0
    %430 = vmatpush.msra.mxu0 0.0
    %431 = vmatpush.msra.mxu0 0.0
    %432 = vmatpush.msra.mxu0 0.0
    %433 = vmatpush.msra.mxu0 0.0
    %434 = vmatpush.msra.mxu0 0.0
    %435 = vmatpush.msra.mxu0 0.0
    %436 = vmatpush.msra.mxu0 0.0
    %437 = vmatpush.msra.mxu0 0.0
    %438 = vmatpush.msra.mxu0 0.0
    %439 = vmatpush.msra.mxu0 0.0
    %440 = vmatpush.msra.mxu0 %v377
    %441 = vmatmul.f32.gmra.mxu0 %v423
    %v442 = vpop.f32.mrf.mxu0
    %v443 = vadd.f32 0.0, %v442
    %444 = vdwg.mxu0
    %v445 = vld [vmem:[#allocation10] sm:$0xff]
    %v446 = vld [vmem:[#allocation10 + $0x8] sm:$0xff]
    %v447 = vld [vmem:[#allocation10 + $0x10] sm:$0xff]
    %v448 = vld [vmem:[#allocation10 + $0x18] sm:$0xff]
    %449 = vrot.lane.b32.xlu0 %v331, 96
    %v450 = vpop.permute.xlu0 %449
    %451 = vrot.lane.b32.xlu0 %v354, 96
    %v452 = vpop.permute.xlu0 %451
    %v453 = vsel %vm382, %v450, 0
    %v455 = vsel %vm382, %v452, 0
    %457 = vmatpush.xpose.msra.mxu0 0.0
    %458 = vmatpush.xpose.msra.mxu0 0.0
    %459 = vmatpush.xpose.msra.mxu0 0.0
    %460 = vmatpush.xpose.msra.mxu0 0.0
    %461 = vmatpush.xpose.msra.mxu0 0.0
    %462 = vmatpush.xpose.msra.mxu0 0.0
    %463 = vmatpush.xpose.msra.mxu0 0.0
    %464 = vmatpush.xpose.msra.mxu0 0.0
    %465 = vmatpush.xpose.msra.mxu0 0.0
    %466 = vmatpush.xpose.msra.mxu0 0.0
    %467 = vmatpush.xpose.msra.mxu0 0.0
    %468 = vmatpush.xpose.msra.mxu0 0.0
    %469 = vmatpush.xpose.msra.mxu0 0.0
    %470 = vmatpush.xpose.msra.mxu0 0.0
    %471 = vmatpush.xpose.msra.mxu0 0.0
    %472 = vmatpush.xpose.msra.mxu0 %v455
    %473 = vmatmul.f32.gmra.mxu0 %v453
    %v474 = vpop.f32.mrf.mxu0
    %v475 = vadd.f32 0.0, %v474
    %476 = vdwg.mxu0
    %v477 = vmul.f32 %v475, 0.17677669
    %v478 = vsel %vm410, %v477, -inf
    %479 = vmax.xlane.f32.xlu0 %v478
    %v480 = vpop.xlane.xlu0 %479
    %v481 = vsub.f32 %v477, %v480
    %v482 = vmul.f32 %v481, 1.442695
    %v483 = vpow.pop %v482
    %v484 = vsel %vm410, %v483, 0.0
    %485 = vadd.xlane.f32.xlu0 %v484
    %v486 = vpop.xlane.xlu0 %485
    %v487 = vrcp.pop %v486
    %v488 = vmul.f32 %v483, %v487
    %490 = vrot.lane.b32.xlu0 %v377, 96
    %v491 = vpop.permute.xlu0 %490
    %v494 = vsel %vm410, %v488, 0
    %496 = vmatpush.msra.mxu0 0.0
    %497 = vmatpush.msra.mxu0 0.0
    %498 = vmatpush.msra.mxu0 0.0
    %499 = vmatpush.msra.mxu0 0.0
    %500 = vmatpush.msra.mxu0 0.0
    %501 = vmatpush.msra.mxu0 0.0
    %502 = vmatpush.msra.mxu0 0.0
    %503 = vmatpush.msra.mxu0 0.0
    %504 = vmatpush.msra.mxu0 0.0
    %505 = vmatpush.msra.mxu0 0.0
    %506 = vmatpush.msra.mxu0 0.0
    %507 = vmatpush.msra.mxu0 0.0
    %508 = vmatpush.msra.mxu0 0.0
    %509 = vmatpush.msra.mxu0 0.0
    %510 = vmatpush.msra.mxu0 0.0
    %511 = vmatpush.msra.mxu0 %v491
    %512 = vmatmul.f32.gmra.mxu0 %v494
    %v513 = vpop.f32.mrf.mxu0
    %v514 = vadd.f32 0.0, %v513
    %515 = vdwg.mxu0
    %v516 = vld [vmem:[#allocation10 + $0x20] sm:$0xff]
    %v517 = vld [vmem:[#allocation10 + $0x28] sm:$0xff]
    %v518 = vld [vmem:[#allocation10 + $0x30] sm:$0xff]
    %v519 = vld [vmem:[#allocation10 + $0x38] sm:$0xff]
    %v521 = vsel %vm382, %v514, 0
    %523 = vmatpush.msra.mxu0 0.0
    %524 = vmatpush.msra.mxu0 0.0
    %525 = vmatpush.msra.mxu0 0.0
    %526 = vmatpush.msra.mxu0 0.0
    %527 = vmatpush.msra.mxu0 0.0
    %528 = vmatpush.msra.mxu0 0.0
    %529 = vmatpush.msra.mxu0 0.0
    %530 = vmatpush.msra.mxu0 0.0
    %531 = vmatpush.msra.mxu0 0.0
    %532 = vmatpush.msra.mxu0 0.0
    %533 = vmatpush.msra.mxu0 0.0
    %534 = vmatpush.msra.mxu0 0.0
    %535 = vmatpush.msra.mxu0 %v519
    %536 = vmatpush.msra.mxu0 %v518
    %537 = vmatpush.msra.mxu0 %v517
    %538 = vmatpush.msra.mxu0 %v516
    %539 = vmatmul.f32.gmra.mxu0 %v521
    %v540 = vpop.f32.mrf.mxu0
    %v541 = vadd.f32 0.0, %v540
    %542 = vdwg.mxu0
    %v544 = vsel %vm382, %v443, 0
    %546 = vmatpush.msra.mxu0 0.0
    %547 = vmatpush.msra.mxu0 0.0
    %548 = vmatpush.msra.mxu0 0.0
    %549 = vmatpush.msra.mxu0 0.0
    %550 = vmatpush.msra.mxu0 0.0
    %551 = vmatpush.msra.mxu0 0.0
    %552 = vmatpush.msra.mxu0 0.0
    %553 = vmatpush.msra.mxu0 0.0
    %554 = vmatpush.msra.mxu0 0.0
    %555 = vmatpush.msra.mxu0 0.0
    %556 = vmatpush.msra.mxu0 0.0
    %557 = vmatpush.msra.mxu0 0.0
    %558 = vmatpush.msra.mxu0 %v448
    %559 = vmatpush.msra.mxu0 %v447
    %560 = vmatpush.msra.mxu0 %v446
    %561 = vmatpush.msra.mxu0 %v445
    %562 = vmatmul.f32.gmra.mxu0 %v544
    %v563 = vpop.f32.mrf.mxu0
    %v564 = vadd.f32 %v541, %v563
    %565 = vdwg.mxu0
    %566 = vrot.lane.b32.xlu0 %v331, 64
    %v567 = vpop.permute.xlu0 %566
    %568 = vrot.lane.b32.xlu0 %v354, 64
    %v569 = vpop.permute.xlu0 %568
    %v570 = vsel %vm382, %v567, 0
    %v572 = vsel %vm382, %v569, 0
    %574 = vmatpush.xpose.msra.mxu0 0.0
    %575 = vmatpush.xpose.msra.mxu0 0.0
    %576 = vmatpush.xpose.msra.mxu0 0.0
    %577 = vmatpush.xpose.msra.mxu0 0.0
    %578 = vmatpush.xpose.msra.mxu0 0.0
    %579 = vmatpush.xpose.msra.mxu0 0.0
    %580 = vmatpush.xpose.msra.mxu0 0.0
    %581 = vmatpush.xpose.msra.mxu0 0.0
    %582 = vmatpush.xpose.msra.mxu0 0.0
    %583 = vmatpush.xpose.msra.mxu0 0.0
    %584 = vmatpush.xpose.msra.mxu0 0.0
    %585 = vmatpush.xpose.msra.mxu0 0.0
    %586 = vmatpush.xpose.msra.mxu0 0.0
    %587 = vmatpush.xpose.msra.mxu0 0.0
    %588 = vmatpush.xpose.msra.mxu0 0.0
    %589 = vmatpush.xpose.msra.mxu0 %v572
    %590 = vmatmul.f32.gmra.mxu0 %v570
    %v591 = vpop.f32.mrf.mxu0
    %v592 = vadd.f32 0.0, %v591
    %593 = vdwg.mxu0
    %v594 = vmul.f32 %v592, 0.17677669
    %v595 = vsel %vm410, %v594, -inf
    %596 = vmax.xlane.f32.xlu0 %v595
    %v597 = vpop.xlane.xlu0 %596
    %v598 = vsub.f32 %v594, %v597
    %v599 = vmul.f32 %v598, 1.442695
    %v600 = vpow.pop %v599
    %v601 = vsel %vm410, %v600, 0.0
    %602 = vadd.xlane.f32.xlu0 %v601
    %v603 = vpop.xlane.xlu0 %602
    %v604 = vrcp.pop %v603
    %v605 = vmul.f32 %v600, %v604
    %606 = vrot.lane.b32.xlu0 %v377, 64
    %v607 = vpop.permute.xlu0 %606
    %v610 = vsel %vm410, %v605, 0
    %612 = vmatpush.msra.mxu0 0.0
    %613 = vmatpush.msra.mxu0 0.0
    %614 = vmatpush.msra.mxu0 0.0
    %615 = vmatpush.msra.mxu0 0.0
    %616 = vmatpush.msra.mxu0 0.0
    %617 = vmatpush.msra.mxu0 0.0
    %618 = vmatpush.msra.mxu0 0.0
    %619 = vmatpush.msra.mxu0 0.0
    %620 = vmatpush.msra.mxu0 0.0
    %621 = vmatpush.msra.mxu0 0.0
    %622 = vmatpush.msra.mxu0 0.0
    %623 = vmatpush.msra.mxu0 0.0
    %624 = vmatpush.msra.mxu0 0.0
    %625 = vmatpush.msra.mxu0 0.0
    %626 = vmatpush.msra.mxu0 0.0
    %627 = vmatpush.msra.mxu0 %v607
    %628 = vmatmul.f32.gmra.mxu0 %v610
    %v629 = vpop.f32.mrf.mxu0
    %v630 = vadd.f32 0.0, %v629
    %631 = vdwg.mxu0
    %v632 = vld [vmem:[#allocation10 + $0x40] sm:$0xff]
    %v633 = vld [vmem:[#allocation10 + $0x48] sm:$0xff]
    %v634 = vld [vmem:[#allocation10 + $0x50] sm:$0xff]
    %v635 = vld [vmem:[#allocation10 + $0x58] sm:$0xff]
    %v637 = vsel %vm382, %v630, 0
    %639 = vmatpush.msra.mxu0 0.0
    %640 = vmatpush.msra.mxu0 0.0
    %641 = vmatpush.msra.mxu0 0.0
    %642 = vmatpush.msra.mxu0 0.0
    %643 = vmatpush.msra.mxu0 0.0
    %644 = vmatpush.msra.mxu0 0.0
    %645 = vmatpush.msra.mxu0 0.0
    %646 = vmatpush.msra.mxu0 0.0
    %647 = vmatpush.msra.mxu0 0.0
    %648 = vmatpush.msra.mxu0 0.0
    %649 = vmatpush.msra.mxu0 0.0
    %650 = vmatpush.msra.mxu0 0.0
    %651 = vmatpush.msra.mxu0 %v635
    %652 = vmatpush.msra.mxu0 %v634
    %653 = vmatpush.msra.mxu0 %v633
    %654 = vmatpush.msra.mxu0 %v632
    %655 = vmatmul.f32.gmra.mxu0 %v637
    %v656 = vpop.f32.mrf.mxu0
    %v657 = vadd.f32 0.0, %v656
    %658 = vdwg.mxu0
    %v659 = vadd.f32 %v564, %v657
    %660 = vrot.lane.b32.xlu0 %v331, 32
    %v661 = vpop.permute.xlu0 %660
    %662 = vrot.lane.b32.xlu0 %v354, 32
    %v663 = vpop.permute.xlu0 %662
    %v664 = vsel %vm382, %v661, 0
    %v666 = vsel %vm382, %v663, 0
    %668 = vmatpush.xpose.msra.mxu0 0.0
    %669 = vmatpush.xpose.msra.mxu0 0.0
    %670 = vmatpush.xpose.msra.mxu0 0.0
    %671 = vmatpush.xpose.msra.mxu0 0.0
    %672 = vmatpush.xpose.msra.mxu0 0.0
    %673 = vmatpush.xpose.msra.mxu0 0.0
    %674 = vmatpush.xpose.msra.mxu0 0.0
    %675 = vmatpush.xpose.msra.mxu0 0.0
    %676 = vmatpush.xpose.msra.mxu0 0.0
    %677 = vmatpush.xpose.msra.mxu0 0.0
    %678 = vmatpush.xpose.msra.mxu0 0.0
    %679 = vmatpush.xpose.msra.mxu0 0.0
    %680 = vmatpush.xpose.msra.mxu0 0.0
    %681 = vmatpush.xpose.msra.mxu0 0.0
    %682 = vmatpush.xpose.msra.mxu0 0.0
    %683 = vmatpush.xpose.msra.mxu0 %v666
    %684 = vmatmul.f32.gmra.mxu0 %v664
    %v685 = vpop.f32.mrf.mxu0
    %v686 = vadd.f32 0.0, %v685
    %687 = vdwg.mxu0
    %v688 = vmul.f32 %v686, 0.17677669
    %v689 = vsel %vm410, %v688, -inf
    %690 = vmax.xlane.f32.xlu0 %v689
    %v691 = vpop.xlane.xlu0 %690
    %v692 = vsub.f32 %v688, %v691
    %v693 = vmul.f32 %v692, 1.442695
    %v694 = vpow.pop %v693
    %v695 = vsel %vm410, %v694, 0.0
    %696 = vadd.xlane.f32.xlu0 %v695
    %v697 = vpop.xlane.xlu0 %696
    %v698 = vrcp.pop %v697
    %v699 = vmul.f32 %v694, %v698
    %700 = vrot.lane.b32.xlu0 %v377, 32
    %v701 = vpop.permute.xlu0 %700
    %v704 = vsel %vm410, %v699, 0
    %706 = vmatpush.msra.mxu0 0.0
    %707 = vmatpush.msra.mxu0 0.0
    %708 = vmatpush.msra.mxu0 0.0
    %709 = vmatpush.msra.mxu0 0.0
    %710 = vmatpush.msra.mxu0 0.0
    %711 = vmatpush.msra.mxu0 0.0
    %712 = vmatpush.msra.mxu0 0.0
    %713 = vmatpush.msra.mxu0 0.0
    %714 = vmatpush.msra.mxu0 0.0
    %715 = vmatpush.msra.mxu0 0.0
    %716 = vmatpush.msra.mxu0 0.0
    %717 = vmatpush.msra.mxu0 0.0
    %718 = vmatpush.msra.mxu0 0.0
    %719 = vmatpush.msra.mxu0 0.0
    %720 = vmatpush.msra.mxu0 0.0
    %721 = vmatpush.msra.mxu0 %v701
    %722 = vmatmul.f32.gmra.mxu0 %v704
    %v723 = vpop.f32.mrf.mxu0
    %v724 = vadd.f32 0.0, %v723
    %725 = vdwg.mxu0
    %v726 = vld [vmem:[#allocation10 + $0x60] sm:$0xff]
    %v727 = vld [vmem:[#allocation10 + $0x68] sm:$0xff]
    %v728 = vld [vmem:[#allocation10 + $0x70] sm:$0xff]
    %v729 = vld [vmem:[#allocation10 + $0x78] sm:$0xff]
    %v731 = vsel %vm382, %v724, 0
    %733 = vmatpush.msra.mxu0 0.0
    %734 = vmatpush.msra.mxu0 0.0
    %735 = vmatpush.msra.mxu0 0.0
    %736 = vmatpush.msra.mxu0 0.0
    %737 = vmatpush.msra.mxu0 0.0
    %738 = vmatpush.msra.mxu0 0.0
    %739 = vmatpush.msra.mxu0 0.0
    %740 = vmatpush.msra.mxu0 0.0
    %741 = vmatpush.msra.mxu0 0.0
    %742 = vmatpush.msra.mxu0 0.0
    %743 = vmatpush.msra.mxu0 0.0
    %744 = vmatpush.msra.mxu0 0.0
    %745 = vmatpush.msra.mxu0 %v729
    %746 = vmatpush.msra.mxu0 %v728
    %747 = vmatpush.msra.mxu0 %v727
    %748 = vmatpush.msra.mxu0 %v726
    %749 = vmatmul.f32.gmra.mxu0 %v731
    %v750 = vpop.f32.mrf.mxu0
    %v751 = vadd.f32 0.0, %v750
    %752 = vdwg.mxu0
    %v753 = vadd.f32 %v659, %v751
    %v755 = vsel %vm382, %v334, 0
    %v758 = vsel %vm382, %v357, 0
    %760 = vmatpush.xpose.msra.mxu0 0.0
    %761 = vmatpush.xpose.msra.mxu0 0.0
    %762 = vmatpush.xpose.msra.mxu0 0.0
    %763 = vmatpush.xpose.msra.mxu0 0.0
    %764 = vmatpush.xpose.msra.mxu0 0.0
    %765 = vmatpush.xpose.msra.mxu0 0.0
    %766 = vmatpush.xpose.msra.mxu0 0.0
    %767 = vmatpush.xpose.msra.mxu0 0.0
    %768 = vmatpush.xpose.msra.mxu0 0.0
    %769 = vmatpush.xpose.msra.mxu0 0.0
    %770 = vmatpush.xpose.msra.mxu0 0.0
    %771 = vmatpush.xpose.msra.mxu0 0.0
    %772 = vmatpush.xpose.msra.mxu0 0.0
    %773 = vmatpush.xpose.msra.mxu0 0.0
    %774 = vmatpush.xpose.msra.mxu0 0.0
    %775 = vmatpush.xpose.msra.mxu0 %v758
    %776 = vmatmul.f32.gmra.mxu0 %v755
    %v777 = vpop.f32.mrf.mxu0
    %v778 = vadd.f32 0.0, %v777
    %779 = vdwg.mxu0
    %v780 = vmul.f32 %v778, 0.17677669
    %v781 = vsel %vm410, %v780, -inf
    %782 = vmax.xlane.f32.xlu0 %v781
    %v783 = vpop.xlane.xlu0 %782
    %v784 = vsub.f32 %v780, %v783
    %v785 = vmul.f32 %v784, 1.442695
    %v786 = vpow.pop %v785
    %v787 = vsel %vm410, %v786, 0.0
    %788 = vadd.xlane.f32.xlu0 %v787
    %v789 = vpop.xlane.xlu0 %788
    %v790 = vrcp.pop %v789
    %v791 = vmul.f32 %v786, %v790
    %v793 = vsel %vm410, %v791, 0
    %795 = vmatpush.msra.mxu0 0.0
    %796 = vmatpush.msra.mxu0 0.0
    %797 = vmatpush.msra.mxu0 0.0
    %798 = vmatpush.msra.mxu0 0.0
    %799 = vmatpush.msra.mxu0 0.0
    %800 = vmatpush.msra.mxu0 0.0
    %801 = vmatpush.msra.mxu0 0.0
    %802 = vmatpush.msra.mxu0 0.0
    %803 = vmatpush.msra.mxu0 0.0
    %804 = vmatpush.msra.mxu0 0.0
    %805 = vmatpush.msra.mxu0 0.0
    %806 = vmatpush.msra.mxu0 0.0
    %807 = vmatpush.msra.mxu0 0.0
    %808 = vmatpush.msra.mxu0 0.0
    %809 = vmatpush.msra.mxu0 0.0
    %810 = vmatpush.msra.mxu0 %v380
    %811 = vmatmul.f32.gmra.mxu0 %v793
    %v812 = vpop.f32.mrf.mxu0
    %v813 = vadd.f32 0.0, %v812
    %814 = vdwg.mxu0
    %815 = vrot.lane.b32.xlu0 %v334, 96
    %v816 = vpop.permute.xlu0 %815
    %817 = vrot.lane.b32.xlu0 %v357, 96
    %v818 = vpop.permute.xlu0 %817
    %v819 = vsel %vm382, %v816, 0
    %v821 = vsel %vm382, %v818, 0
    %823 = vmatpush.xpose.msra.mxu0 0.0
    %824 = vmatpush.xpose.msra.mxu0 0.0
    %825 = vmatpush.xpose.msra.mxu0 0.0
    %826 = vmatpush.xpose.msra.mxu0 0.0
    %827 = vmatpush.xpose.msra.mxu0 0.0
    %828 = vmatpush.xpose.msra.mxu0 0.0
    %829 = vmatpush.xpose.msra.mxu0 0.0
    %830 = vmatpush.xpose.msra.mxu0 0.0
    %831 = vmatpush.xpose.msra.mxu0 0.0
    %832 = vmatpush.xpose.msra.mxu0 0.0
    %833 = vmatpush.xpose.msra.mxu0 0.0
    %834 = vmatpush.xpose.msra.mxu0 0.0
    %835 = vmatpush.xpose.msra.mxu0 0.0
    %836 = vmatpush.xpose.msra.mxu0 0.0
    %837 = vmatpush.xpose.msra.mxu0 0.0
    %838 = vmatpush.xpose.msra.mxu0 %v821
    %839 = vmatmul.f32.gmra.mxu0 %v819
    %v840 = vpop.f32.mrf.mxu0
    %v841 = vadd.f32 0.0, %v840
    %842 = vdwg.mxu0
    %v843 = vmul.f32 %v841, 0.17677669
    %v844 = vsel %vm410, %v843, -inf
    %845 = vmax.xlane.f32.xlu0 %v844
    %v846 = vpop.xlane.xlu0 %845
    %v847 = vsub.f32 %v843, %v846
    %v848 = vmul.f32 %v847, 1.442695
    %v849 = vpow.pop %v848
    %v850 = vsel %vm410, %v849, 0.0
    %851 = vadd.xlane.f32.xlu0 %v850
    %v852 = vpop.xlane.xlu0 %851
    %v853 = vrcp.pop %v852
    %v854 = vmul.f32 %v849, %v853
    %856 = vrot.lane.b32.xlu0 %v380, 96
    %v857 = vpop.permute.xlu0 %856
    %v860 = vsel %vm410, %v854, 0
    %862 = vmatpush.msra.mxu0 0.0
    %863 = vmatpush.msra.mxu0 0.0
    %864 = vmatpush.msra.mxu0 0.0
    %865 = vmatpush.msra.mxu0 0.0
    %866 = vmatpush.msra.mxu0 0.0
    %867 = vmatpush.msra.mxu0 0.0
    %868 = vmatpush.msra.mxu0 0.0
    %869 = vmatpush.msra.mxu0 0.0
    %870 = vmatpush.msra.mxu0 0.0
    %871 = vmatpush.msra.mxu0 0.0
    %872 = vmatpush.msra.mxu0 0.0
    %873 = vmatpush.msra.mxu0 0.0
    %874 = vmatpush.msra.mxu0 0.0
    %875 = vmatpush.msra.mxu0 0.0
    %876 = vmatpush.msra.mxu0 0.0
    %877 = vmatpush.msra.mxu0 %v857
    %878 = vmatmul.f32.gmra.mxu0 %v860
    %v879 = vpop.f32.mrf.mxu0
    %v880 = vadd.f32 0.0, %v879
    %881 = vdwg.mxu0
    %v883 = vsel %vm382, %v880, 0
    %885 = vmatpush.msra.mxu0 0.0
    %886 = vmatpush.msra.mxu0 0.0
    %887 = vmatpush.msra.mxu0 0.0
    %888 = vmatpush.msra.mxu0 0.0
    %889 = vmatpush.msra.mxu0 0.0
    %890 = vmatpush.msra.mxu0 0.0
    %891 = vmatpush.msra.mxu0 0.0
    %892 = vmatpush.msra.mxu0 0.0
    %893 = vmatpush.msra.mxu0 0.0
    %894 = vmatpush.msra.mxu0 0.0
    %895 = vmatpush.msra.mxu0 0.0
    %896 = vmatpush.msra.mxu0 0.0
    %897 = vmatpush.msra.mxu0 %v519
    %898 = vmatpush.msra.mxu0 %v518
    %899 = vmatpush.msra.mxu0 %v517
    %900 = vmatpush.msra.mxu0 %v516
    %901 = vmatmul.f32.gmra.mxu0 %v883
    %v902 = vpop.f32.mrf.mxu0
    %v903 = vadd.f32 0.0, %v902
    %904 = vdwg.mxu0
    %v906 = vsel %vm382, %v813, 0
    %908 = vmatpush.msra.mxu0 0.0
    %909 = vmatpush.msra.mxu0 0.0
    %910 = vmatpush.msra.mxu0 0.0
    %911 = vmatpush.msra.mxu0 0.0
    %912 = vmatpush.msra.mxu0 0.0
    %913 = vmatpush.msra.mxu0 0.0
    %914 = vmatpush.msra.mxu0 0.0
    %915 = vmatpush.msra.mxu0 0.0
    %916 = vmatpush.msra.mxu0 0.0
    %917 = vmatpush.msra.mxu0 0.0
    %918 = vmatpush.msra.mxu0 0.0
    %919 = vmatpush.msra.mxu0 0.0
    %920 = vmatpush.msra.mxu0 %v448
    %921 = vmatpush.msra.mxu0 %v447
    %922 = vmatpush.msra.mxu0 %v446
    %923 = vmatpush.msra.mxu0 %v445
    %924 = vmatmul.f32.gmra.mxu0 %v906
    %v925 = vpop.f32.mrf.mxu0
    %v926 = vadd.f32 %v903, %v925
    %927 = vdwg.mxu0
    %928 = vrot.lane.b32.xlu0 %v334, 64
    %v929 = vpop.permute.xlu0 %928
    %930 = vrot.lane.b32.xlu0 %v357, 64
    %v931 = vpop.permute.xlu0 %930
    %v932 = vsel %vm382, %v929, 0
    %v934 = vsel %vm382, %v931, 0
    %936 = vmatpush.xpose.msra.mxu0 0.0
    %937 = vmatpush.xpose.msra.mxu0 0.0
    %938 = vmatpush.xpose.msra.mxu0 0.0
    %939 = vmatpush.xpose.msra.mxu0 0.0
    %940 = vmatpush.xpose.msra.mxu0 0.0
    %941 = vmatpush.xpose.msra.mxu0 0.0
    %942 = vmatpush.xpose.msra.mxu0 0.0
    %943 = vmatpush.xpose.msra.mxu0 0.0
    %944 = vmatpush.xpose.msra.mxu0 0.0
    %945 = vmatpush.xpose.msra.mxu0 0.0
    %946 = vmatpush.xpose.msra.mxu0 0.0
    %947 = vmatpush.xpose.msra.mxu0 0.0
    %948 = vmatpush.xpose.msra.mxu0 0.0
    %949 = vmatpush.xpose.msra.mxu0 0.0
    %950 = vmatpush.xpose.msra.mxu0 0.0
    %951 = vmatpush.xpose.msra.mxu0 %v934
    %952 = vmatmul.f32.gmra.mxu0 %v932
    %v953 = vpop.f32.mrf.mxu0
    %v954 = vadd.f32 0.0, %v953
    %955 = vdwg.mxu0
    %v956 = vmul.f32 %v954, 0.17677669
    %v957 = vsel %vm410, %v956, -inf
    %958 = vmax.xlane.f32.xlu0 %v957
    %v959 = vpop.xlane.xlu0 %958
    %v960 = vsub.f32 %v956, %v959
    %v961 = vmul.f32 %v960, 1.442695
    %v962 = vpow.pop %v961
    %v963 = vsel %vm410, %v962, 0.0
    %964 = vadd.xlane.f32.xlu0 %v963
    %v965 = vpop.xlane.xlu0 %964
    %v966 = vrcp.pop %v965
    %v967 = vmul.f32 %v962, %v966
    %968 = vrot.lane.b32.xlu0 %v380, 64
    %v969 = vpop.permute.xlu0 %968
    %v972 = vsel %vm410, %v967, 0
    %974 = vmatpush.msra.mxu0 0.0
    %975 = vmatpush.msra.mxu0 0.0
    %976 = vmatpush.msra.mxu0 0.0
    %977 = vmatpush.msra.mxu0 0.0
    %978 = vmatpush.msra.mxu0 0.0
    %979 = vmatpush.msra.mxu0 0.0
    %980 = vmatpush.msra.mxu0 0.0
    %981 = vmatpush.msra.mxu0 0.0
    %982 = vmatpush.msra.mxu0 0.0
    %983 = vmatpush.msra.mxu0 0.0
    %984 = vmatpush.msra.mxu0 0.0
    %985 = vmatpush.msra.mxu0 0.0
    %986 = vmatpush.msra.mxu0 0.0
    %987 = vmatpush.msra.mxu0 0.0
    %988 = vmatpush.msra.mxu0 0.0
    %989 = vmatpush.msra.mxu0 %v969
    %990 = vmatmul.f32.gmra.mxu0 %v972
    %v991 = vpop.f32.mrf.mxu0
    %v992 = vadd.f32 0.0, %v991
    %993 = vdwg.mxu0
    %v995 = vsel %vm382, %v992, 0
    %997 = vmatpush.msra.mxu0 0.0
    %998 = vmatpush.msra.mxu0 0.0
    %999 = vmatpush.msra.mxu0 0.0
    %1000 = vmatpush.msra.mxu0 0.0
    %1001 = vmatpush.msra.mxu0 0.0
    %1002 = vmatpush.msra.mxu0 0.0
    %1003 = vmatpush.msra.mxu0 0.0
    %1004 = vmatpush.msra.mxu0 0.0
    %1005 = vmatpush.msra.mxu0 0.0
    %1006 = vmatpush.msra.mxu0 0.0
    %1007 = vmatpush.msra.mxu0 0.0
    %1008 = vmatpush.msra.mxu0 0.0
    %1009 = vmatpush.msra.mxu0 %v635
    %1010 = vmatpush.msra.mxu0 %v634
    %1011 = vmatpush.msra.mxu0 %v633
    %1012 = vmatpush.msra.mxu0 %v632
    %1013 = vmatmul.f32.gmra.mxu0 %v995
    %v1014 = vpop.f32.mrf.mxu0
    %v1015 = vadd.f32 0.0, %v1014
    %1016 = vdwg.mxu0
    %v1017 = vadd.f32 %v926, %v1015
    %1018 = vrot.lane.b32.xlu0 %v334, 32
    %v1019 = vpop.permute.xlu0 %1018
    %1020 = vrot.lane.b32.xlu0 %v357, 32
    %v1021 = vpop.permute.xlu0 %1020
    %v1022 = vsel %vm382, %v1019, 0
    %v1024 = vsel %vm382, %v1021, 0
    %1026 = vmatpush.xpose.msra.mxu0 0.0
    %1027 = vmatpush.xpose.msra.mxu0 0.0
    %1028 = vmatpush.xpose.msra.mxu0 0.0
    %1029 = vmatpush.xpose.msra.mxu0 0.0
    %1030 = vmatpush.xpose.msra.mxu0 0.0
    %1031 = vmatpush.xpose.msra.mxu0 0.0
    %1032 = vmatpush.xpose.msra.mxu0 0.0
    %1033 = vmatpush.xpose.msra.mxu0 0.0
    %1034 = vmatpush.xpose.msra.mxu0 0.0
    %1035 = vmatpush.xpose.msra.mxu0 0.0
    %1036 = vmatpush.xpose.msra.mxu0 0.0
    %1037 = vmatpush.xpose.msra.mxu0 0.0
    %1038 = vmatpush.xpose.msra.mxu0 0.0
    %1039 = vmatpush.xpose.msra.mxu0 0.0
    %1040 = vmatpush.xpose.msra.mxu0 0.0
    %1041 = vmatpush.xpose.msra.mxu0 %v1024
    %1042 = vmatmul.f32.gmra.mxu0 %v1022
    %v1043 = vpop.f32.mrf.mxu0
    %v1044 = vadd.f32 0.0, %v1043
    %1045 = vdwg.mxu0
    %v1046 = vmul.f32 %v1044, 0.17677669
    %v1047 = vsel %vm410, %v1046, -inf
    %1048 = vmax.xlane.f32.xlu0 %v1047
    %v1049 = vpop.xlane.xlu0 %1048
    %v1050 = vsub.f32 %v1046, %v1049
    %v1051 = vmul.f32 %v1050, 1.442695
    %v1052 = vpow.pop %v1051
    %v1053 = vsel %vm410, %v1052, 0.0
    %1054 = vadd.xlane.f32.xlu0 %v1053
    %v1055 = vpop.xlane.xlu0 %1054
    %v1056 = vrcp.pop %v1055
    %v1057 = vmul.f32 %v1052, %v1056
    %1058 = vrot.lane.b32.xlu0 %v380, 32
    %v1059 = vpop.permute.xlu0 %1058
    %v1062 = vsel %vm410, %v1057, 0
    %1064 = vmatpush.msra.mxu0 0.0
    %1065 = vmatpush.msra.mxu0 0.0
    %1066 = vmatpush.msra.mxu0 0.0
    %1067 = vmatpush.msra.mxu0 0.0
    %1068 = vmatpush.msra.mxu0 0.0
    %1069 = vmatpush.msra.mxu0 0.0
    %1070 = vmatpush.msra.mxu0 0.0
    %1071 = vmatpush.msra.mxu0 0.0
    %1072 = vmatpush.msra.mxu0 0.0
    %1073 = vmatpush.msra.mxu0 0.0
    %1074 = vmatpush.msra.mxu0 0.0
    %1075 = vmatpush.msra.mxu0 0.0
    %1076 = vmatpush.msra.mxu0 0.0
    %1077 = vmatpush.msra.mxu0 0.0
    %1078 = vmatpush.msra.mxu0 0.0
    %1079 = vmatpush.msra.mxu0 %v1059
    %1080 = vmatmul.f32.gmra.mxu0 %v1062
    %v1081 = vpop.f32.mrf.mxu0
    %v1082 = vadd.f32 0.0, %v1081
    %1083 = vdwg.mxu0
    %v1085 = vsel %vm382, %v1082, 0
    %1087 = vmatpush.msra.mxu0 0.0
    %1088 = vmatpush.msra.mxu0 0.0
    %1089 = vmatpush.msra.mxu0 0.0
    %1090 = vmatpush.msra.mxu0 0.0
    %1091 = vmatpush.msra.mxu0 0.0
    %1092 = vmatpush.msra.mxu0 0.0
    %1093 = vmatpush.msra.mxu0 0.0
    %1094 = vmatpush.msra.mxu0 0.0
    %1095 = vmatpush.msra.mxu0 0.0
    %1096 = vmatpush.msra.mxu0 0.0
    %1097 = vmatpush.msra.mxu0 0.0
    %1098 = vmatpush.msra.mxu0 0.0
    %1099 = vmatpush.msra.mxu0 %v729
    %1100 = vmatpush.msra.mxu0 %v728
    %1101 = vmatpush.msra.mxu0 %v727
    %1102 = vmatpush.msra.mxu0 %v726
    %1103 = vmatmul.f32.gmra.mxu0 %v1085
    %v1104 = vpop.f32.mrf.mxu0
    %v1105 = vadd.f32 0.0, %v1104
    %1106 = vdwg.mxu0
    %v1107 = vadd.f32 %v1017, %v1105
    %v1108 = vld [vmem:[#allocation11] sm:$0x1]
    %v1110 = vperm.slane %v1108, 0
    %v1112 = vadd.f32 %v753, %v1110
    %v1113 = vadd.f32 %v1107, %v1110
    %v1114 = vadd.f32 %v164, %v1112
    %v1115 = vadd.f32 %v165, %v1113
    %v1116 = vld [vmem:[%s7] sm:$0x1]
    %v1117 = vld [vmem:[%s8] sm:$0x1]
    %1118 = vadd.xlane.f32.xlu0 %v1114
    %v1119 = vpop.xlane.xlu0 %1118
    %1120 = vadd.xlane.f32.xlu0 %v1115
    %v1121 = vpop.xlane.xlu0 %1120
    %v1122 = vmul.f32 %v1119, %v178
    %v1123 = vmul.f32 %v1121, %v178
    %v1124 = vsub.f32 %v1114, %v1122
    %v1125 = vsub.f32 %v1115, %v1123
    %v1126 = vmul.f32 %v1124, %v1124
    %v1127 = vmul.f32 %v1125, %v1125
    %1128 = vadd.xlane.f32.xlu0 %v1126
    %v1129 = vpop.xlane.xlu0 %1128
    %1130 = vadd.xlane.f32.xlu0 %v1127
    %v1131 = vpop.xlane.xlu0 %1130
    %v1132 = vmul.f32 %v1129, 0.007874016
    %v1133 = vmul.f32 %v1131, 0.007874016
    %v1135 = vperm.slane %v1116, 0
    %v1137 = vmul.f32 %v1135, %v1124
    %v1138 = vmul.f32 %v1135, %v1125
    %v1139 = vrsqrt.pop %v1132
    %v1140 = vmul.f32 %v1139, %v1132
    %v1141 = vmul.f32 %v1140, %v1139
    %v1142 = vmul.f32 0.5, %v1141
    %v1143 = vsub.f32 1.5, %v1142
    %v1144 = vmul.f32 %v1139, %v1143
    %v1145 = vmul.f32 %v1132, %v1144
    %vm1146 = vcmp.eq.f32.partialorder %v1132, inf
    %v1147 = vsel %vm1146, %v1132, %v1145
    %vm1148 = vcmp.eq.f32.partialorder %v1132, 0.0
    %v1149 = vand.u32 %v1132, 2147483648
    %v1150 = vsel %vm1148, %v1149, %v1147
    %v1151 = vrsqrt.pop %v1133
    %v1152 = vmul.f32 %v1151, %v1133
    %v1153 = vmul.f32 %v1152, %v1151
    %v1154 = vmul.f32 0.5, %v1153
    %v1155 = vsub.f32 1.5, %v1154
    %v1156 = vmul.f32 %v1151, %v1155
    %v1157 = vmul.f32 %v1133, %v1156
    %vm1158 = vcmp.eq.f32.partialorder %v1133, inf
    %v1159 = vsel %vm1158, %v1133, %v1157
    %vm1160 = vcmp.eq.f32.partialorder %v1133, 0.0
    %v1161 = vand.u32 %v1133, 2147483648
    %v1162 = vsel %vm1160, %v1161, %v1159
    %v1163 = vadd.f32 %v1150, 1e-06
    %v1164 = vadd.f32 %v1162, 1e-06
    %v1165 = vrcp.pop %v1163
    %v1166 = vmul.f32 %v1163, %v1165
    %v1167 = vsub.f32 1.0, %v1166
    %v1168 = vmul.f32 %v1165, %v1167
    %v1169 = vadd.f32 %v1165, %v1168
    %vm1170 = vweird.f32 %v1163
    %vm1171 = vweird.f32 %v1165
    %vm1172 = vmor %vm1170, %vm1171
    %v1173 = vsel %vm1172, %v1165, %v1169
    %v1174 = vand.u32 2147483647, %v1163
    %vm1175 = vcmp.eq.f32.partialorder %v1174, 8.507059e+37
    %v1176 = vand.u32 %v1163, 2147483648
    %v1177 = vor.u32 1.1754944e-38, %v1176
    %v1178 = vsel %vm1175, %v1177, %v1173
    %v1179 = vmul.f32 %v1137, %v1178
    %v1180 = vrcp.pop %v1164
    %v1181 = vmul.f32 %v1164, %v1180
    %v1182 = vsub.f32 1.0, %v1181
    %v1183 = vmul.f32 %v1180, %v1182
    %v1184 = vadd.f32 %v1180, %v1183
    %vm1185 = vweird.f32 %v1164
    %vm1186 = vweird.f32 %v1180
    %vm1187 = vmor %vm1185, %vm1186
    %v1188 = vsel %vm1187, %v1180, %v1184
    %v1189 = vand.u32 2147483647, %v1164
    %vm1190 = vcmp.eq.f32.partialorder %v1189, 8.507059e+37
    %v1191 = vand.u32 %v1164, 2147483648
    %v1192 = vor.u32 1.1754944e-38, %v1191
    %v1193 = vsel %vm1190, %v1192, %v1188
    %v1194 = vmul.f32 %v1138, %v1193
    %v1196 = vperm.slane %v1117, 0
    %v1198 = vadd.f32 %v1179, %v1196
    %v1199 = vadd.f32 %v1194, %v1196
    %v1200 = vld [vmem:[#allocation13] sm:$0xff]
    %v1201 = vld [vmem:[#allocation13 + $0x8] sm:$0xff]
    %v1202 = vld [vmem:[#allocation13 + $0x10] sm:$0xff]
    %v1203 = vld [vmem:[#allocation13 + $0x18] sm:$0xff]
    %v1204 = vld [vmem:[#allocation13 + $0x20] sm:$0xff]
    %v1205 = vld [vmem:[#allocation13 + $0x28] sm:$0xff]
    %v1206 = vld [vmem:[#allocation13 + $0x30] sm:$0xff]
    %v1207 = vld [vmem:[#allocation13 + $0x38] sm:$0xff]
    %v1208 = vld [vmem:[#allocation13 + $0x40] sm:$0xff]
    %v1209 = vld [vmem:[#allocation13 + $0x48] sm:$0xff]
    %v1210 = vld [vmem:[#allocation13 + $0x50] sm:$0xff]
    %v1211 = vld [vmem:[#allocation13 + $0x58] sm:$0xff]
    %v1212 = vld [vmem:[#allocation13 + $0x60] sm:$0xff]
    %v1213 = vld [vmem:[#allocation13 + $0x68] sm:$0xff]
    %v1214 = vld [vmem:[#allocation13 + $0x70] sm:$0xff]
    %v1215 = vld [vmem:[#allocation13 + $0x78] sm:$0xff]
    %v1216 = vld [vmem:[#allocation13 + $0x80] sm:$0xff]
    %v1217 = vld [vmem:[#allocation13 + $0x88] sm:$0xff]
    %v1218 = vld [vmem:[#allocation13 + $0x90] sm:$0xff]
    %v1219 = vld [vmem:[#allocation13 + $0x98] sm:$0xff]
    %v1220 = vld [vmem:[#allocation13 + $0xa0] sm:$0xff]
    %v1221 = vld [vmem:[#allocation13 + $0xa8] sm:$0xff]
    %v1222 = vld [vmem:[#allocation13 + $0xb0] sm:$0xff]
    %v1223 = vld [vmem:[#allocation13 + $0xb8] sm:$0xff]
    %v1224 = vld [vmem:[#allocation13 + $0xc0] sm:$0xff]
    %v1225 = vld [vmem:[#allocation13 + $0xc8] sm:$0xff]
    %v1226 = vld [vmem:[#allocation13 + $0xd0] sm:$0xff]
    %v1227 = vld [vmem:[#allocation13 + $0xd8] sm:$0xff]
    %v1228 = vld [vmem:[#allocation13 + $0xe0] sm:$0xff]
    %v1229 = vld [vmem:[#allocation13 + $0xe8] sm:$0xff]
    %v1230 = vld [vmem:[#allocation13 + $0xf0] sm:$0xff]
    %v1231 = vld [vmem:[#allocation13 + $0xf8] sm:$0xff]
    %v1232 = vld [vmem:[%s10] sm:$0x3]
    %v1234 = vperm.slane %v1232, 0
    %v1235 = vperm.slane %v1232, 1
    %1238 = vmatpush.msra.mxu0 %v1230
    %1239 = vmatpush.msra.mxu0 %v1228
    %1240 = vmatpush.msra.mxu0 %v1226
    %1241 = vmatpush.msra.mxu0 %v1224
    %1242 = vmatpush.msra.mxu0 %v1222
    %1243 = vmatpush.msra.mxu0 %v1220
    %1244 = vmatpush.msra.mxu0 %v1218
    %1245 = vmatpush.msra.mxu0 %v1216
    %1246 = vmatpush.msra.mxu0 %v1214
    %1247 = vmatpush.msra.mxu0 %v1212
    %1248 = vmatpush.msra.mxu0 %v1210
    %1249 = vmatpush.msra.mxu0 %v1208
    %1250 = vmatpush.msra.mxu0 %v1206
    %1251 = vmatpush.msra.mxu0 %v1204
    %1252 = vmatpush.msra.mxu0 %v1202
    %1253 = vmatpush.msra.mxu0 %v1200
    %1254 = vmatmul.f32.gmra.mxu0 %v1198
    %v1255 = vpop.f32.mrf.mxu0
    %v1256 = vadd.f32 %v1234, %v1255
    %1257 = vmatmul.f32.gmra.mxu0 %v1199
    %v1258 = vpop.f32.mrf.mxu0
    %v1259 = vadd.f32 %v1234, %v1258
    %1260 = vdwg.mxu0
    %1261 = vmatpush.msra.mxu0 %v1231
    %1262 = vmatpush.msra.mxu0 %v1229
    %1263 = vmatpush.msra.mxu0 %v1227
    %1264 = vmatpush.msra.mxu0 %v1225
    %1265 = vmatpush.msra.mxu0 %v1223
    %1266 = vmatpush.msra.mxu0 %v1221
    %1267 = vmatpush.msra.mxu0 %v1219
    %1268 = vmatpush.msra.mxu0 %v1217
    %1269 = vmatpush.msra.mxu0 %v1215
    %1270 = vmatpush.msra.mxu0 %v1213
    %1271 = vmatpush.msra.mxu0 %v1211
    %1272 = vmatpush.msra.mxu0 %v1209
    %1273 = vmatpush.msra.mxu0 %v1207
    %1274 = vmatpush.msra.mxu0 %v1205
    %1275 = vmatpush.msra.mxu0 %v1203
    %1276 = vmatpush.msra.mxu0 %v1201
    %1277 = vmatmul.f32.gmra.mxu0 %v1198
    %v1278 = vpop.f32.mrf.mxu0
    %v1279 = vadd.f32 %v1235, %v1278
    %1280 = vmatmul.f32.gmra.mxu0 %v1199
    %v1281 = vpop.f32.mrf.mxu0
    %v1282 = vadd.f32 %v1235, %v1281
    %1283 = vdwg.mxu0
    %v1284 = vmax.f32 %v1256, 0.0
    %v1285 = vmax.f32 %v1279, 0.0
    %v1286 = vmax.f32 %v1259, 0.0
    %v1287 = vmax.f32 %v1282, 0.0
    %v1288 = vld [vmem:[#allocation14] sm:$0xff]
    %v1289 = vld [vmem:[#allocation14 + $0x8] sm:$0xff]
    %v1290 = vld [vmem:[#allocation14 + $0x10] sm:$0xff]
    %v1291 = vld [vmem:[#allocation14 + $0x18] sm:$0xff]
    %v1292 = vld [vmem:[#allocation14 + $0x20] sm:$0xff]
    %v1293 = vld [vmem:[#allocation14 + $0x28] sm:$0xff]
    %v1294 = vld [vmem:[#allocation14 + $0x30] sm:$0xff]
    %v1295 = vld [vmem:[#allocation14 + $0x38] sm:$0xff]
    %v1296 = vld [vmem:[#allocation14 + $0x40] sm:$0xff]
    %v1297 = vld [vmem:[#allocation14 + $0x48] sm:$0xff]
    %v1298 = vld [vmem:[#allocation14 + $0x50] sm:$0xff]
    %v1299 = vld [vmem:[#allocation14 + $0x58] sm:$0xff]
    %v1300 = vld [vmem:[#allocation14 + $0x60] sm:$0xff]
    %v1301 = vld [vmem:[#allocation14 + $0x68] sm:$0xff]
    %v1302 = vld [vmem:[#allocation14 + $0x70] sm:$0xff]
    %v1303 = vld [vmem:[#allocation14 + $0x78] sm:$0xff]
    %v1304 = vld [vmem:[#allocation14 + $0x80] sm:$0xff]
    %v1305 = vld [vmem:[#allocation14 + $0x88] sm:$0xff]
    %v1306 = vld [vmem:[#allocation14 + $0x90] sm:$0xff]
    %v1307 = vld [vmem:[#allocation14 + $0x98] sm:$0xff]
    %v1308 = vld [vmem:[#allocation14 + $0xa0] sm:$0xff]
    %v1309 = vld [vmem:[#allocation14 + $0xa8] sm:$0xff]
    %v1310 = vld [vmem:[#allocation14 + $0xb0] sm:$0xff]
    %v1311 = vld [vmem:[#allocation14 + $0xb8] sm:$0xff]
    %v1312 = vld [vmem:[#allocation14 + $0xc0] sm:$0xff]
    %v1313 = vld [vmem:[#allocation14 + $0xc8] sm:$0xff]
    %v1314 = vld [vmem:[#allocation14 + $0xd0] sm:$0xff]
    %v1315 = vld [vmem:[#allocation14 + $0xd8] sm:$0xff]
    %v1316 = vld [vmem:[#allocation14 + $0xe0] sm:$0xff]
    %v1317 = vld [vmem:[#allocation14 + $0xe8] sm:$0xff]
    %v1318 = vld [vmem:[#allocation14 + $0xf0] sm:$0xff]
    %v1319 = vld [vmem:[#allocation14 + $0xf8] sm:$0xff]
    %v1320 = vld [vmem:[%s12] sm:$0x1]
    %v1322 = vperm.slane %v1320, 0
    %1324 = vmatpush.msra.mxu0 %v1303
    %1325 = vmatpush.msra.mxu0 %v1302
    %1326 = vmatpush.msra.mxu0 %v1301
    %1327 = vmatpush.msra.mxu0 %v1300
    %1328 = vmatpush.msra.mxu0 %v1299
    %1329 = vmatpush.msra.mxu0 %v1298
    %1330 = vmatpush.msra.mxu0 %v1297
    %1331 = vmatpush.msra.mxu0 %v1296
    %1332 = vmatpush.msra.mxu0 %v1295
    %1333 = vmatpush.msra.mxu0 %v1294
    %1334 = vmatpush.msra.mxu0 %v1293
    %1335 = vmatpush.msra.mxu0 %v1292
    %1336 = vmatpush.msra.mxu0 %v1291
    %1337 = vmatpush.msra.mxu0 %v1290
    %1338 = vmatpush.msra.mxu0 %v1289
    %1339 = vmatpush.msra.mxu0 %v1288
    %1340 = vmatmul.f32.gmra.mxu0 %v1284
    %v1341 = vpop.f32.mrf.mxu0
    %v1342 = vadd.f32 %v1322, %v1341
    %1343 = vmatmul.f32.gmra.mxu0 %v1286
    %v1344 = vpop.f32.mrf.mxu0
    %v1345 = vadd.f32 %v1322, %v1344
    %1346 = vdwg.mxu0
    %1347 = vmatpush.msra.mxu0 %v1319
    %1348 = vmatpush.msra.mxu0 %v1318
    %1349 = vmatpush.msra.mxu0 %v1317
    %1350 = vmatpush.msra.mxu0 %v1316
    %1351 = vmatpush.msra.mxu0 %v1315
    %1352 = vmatpush.msra.mxu0 %v1314
    %1353 = vmatpush.msra.mxu0 %v1313
    %1354 = vmatpush.msra.mxu0 %v1312
    %1355 = vmatpush.msra.mxu0 %v1311
    %1356 = vmatpush.msra.mxu0 %v1310
    %1357 = vmatpush.msra.mxu0 %v1309
    %1358 = vmatpush.msra.mxu0 %v1308
    %1359 = vmatpush.msra.mxu0 %v1307
    %1360 = vmatpush.msra.mxu0 %v1306
    %1361 = vmatpush.msra.mxu0 %v1305
    %1362 = vmatpush.msra.mxu0 %v1304
    %1363 = vmatmul.f32.gmra.mxu0 %v1285
    %v1364 = vpop.f32.mrf.mxu0
    %v1365 = vadd.f32 %v1342, %v1364
    %1366 = vmatmul.f32.gmra.mxu0 %v1287
    %v1367 = vpop.f32.mrf.mxu0
    %v1368 = vadd.f32 %v1345, %v1367
    %1369 = vdwg.mxu0
    %v1370 = vadd.f32 %v1114, %v1365
    %v1371 = vadd.f32 %v1115, %v1368
    %1372 = vst [vmem:[#allocation16] sm:$0xff] %v1370
    %1373 = vst [vmem:[#allocation16 + $0x8] sm:$0xff] %v1371
    // Predicated region
    $region86: #{tpu_custom_call.1} parent=1 // pred_check
      _
    $region87: #{tpu_custom_call.1} parent=1 // pred_check_branch
      %1375 = sbr.rel (0) target = $region89
    $region88: #{tpu_custom_call.1} parent=1 // pred_region
      %1377 = vsyncadd [#allocation4], 0
      %s1378 = sshll.u32 [#allocation16], 4
      %s1379 = int_to_ptr.vmem [resolvable:$true] %s1378
      %s1380 = sshll.u32 %s13, 4
      %s1381 = int_to_ptr.hbm [resolvable:$true] %s1380
      %1386 = dma.vmem_to_hbm [thread:$0]  %s1379, 256, %s1381, [#allocation4], 128, 128, 8
    $region89: #{tpu_custom_call.1} parent=1 // pred_fallthru
      _
    // Predicated region
    $region90: #{tpu_custom_call.1} parent=1 // pred_check
      _
    $region91: #{tpu_custom_call.1} parent=1 // pred_check_branch
      %1388 = sbr.rel (0) target = $region93
    $region92: #{tpu_custom_call.1} parent=1 // pred_region
      %1390 = dma.done [#allocation4], 256
    $region93: #{tpu_custom_call.1} parent=1 // pred_fallthru
      _
    %1391 = vsyncpa [#allocation3], 1
    %1392 = vsyncpa [#allocation6], 1
    %1393 = vsyncpa [#allocation9], 1
    %1394 = vsyncpa [#allocation12], 1
    %1395 = vsyncpa [#allocation15], 1
    %1396 = vsyncpa [#allocation4], 1

</llo_original>
